<compile_context>
chip_gen: v5e
topology: v5e:2x2
jax: 0.10.0
libtpu: 0.0.40
codegen_flags: <defaults>
</compile_context>

<pallas_src>
import math
from functools import partial

import numpy as np
import jax
import jax.numpy as jnp
from jax.experimental import pallas as pl
from jax.experimental.pallas import tpu as pltpu

_NUM_SCALAR_PREFETCH = 2  # (counts, ktile_ids)


def _round_up(x, m):
    return ((x + m - 1) // m) * m


# ---------------------------------------------------------------------------
# Tile / VMEM planning
# ---------------------------------------------------------------------------
def _choose_tiles(n_pad, d_pad, tile_budget):
    divs = [t for t in (512, 256, 128) if t <= n_pad and n_pad % t == 0]

    tm = None
    for t in divs:                                   # prefer even row-tile count (v7x 2 TCs)
        if n_pad // t >= 2 and (n_pad // t) % 2 == 0:
            tm = t
            break
    if tm is None:
        for t in divs:
            if n_pad // t >= 2:
                tm = t
                break
    if tm is None:
        tm = n_pad

    def vmem_need(tm_, tk_):
        return (2 * tm_ * tk_                        # int8 G tiles (double buffered)
                + 2 * tk_ * d_pad * 2                # bf16 emb contraction tiles
                + 4 * tm_ * d_pad * 4                # f32 acc in/out tiles
                + 2 * tm_ * d_pad * 2                # bf16 emb_out tiles
                + 2 * tm_ * 128 * 4                  # (tm,1) scale tiles (lane padded)
                + tm_ * d_pad * 4)                   # f32 matmul scratch

    tk = None
    for t in (4096, 2048, 1024, 512, 256, 128):      # big tk amortizes per-step overhead
        if (t <= n_pad and n_pad % t == 0 and n_pad // t >= 2
                and vmem_need(tm, t) <= tile_budget):
            tk = t
            break
    if tk is None:
        tk = n_pad                                   # single contraction tile
    return tm, tk


def _make_propagation_plan(graph_np, latent_dim):
    """Pad, int8-quantize (per-row scale) and block-sparsify the adjacency."""
    N = graph_np.shape[0]
    pad_to = 512 if N >= 2048 else 128
    n_pad = _round_up(N, pad_to)
    d_pad = _round_up(latent_dim, 128)

    # Generation-aware VMEM budget (v7x: 64 MiB/TC, v5e/v6e: 128 MiB).
    try:
        vmem_cap = int(pltpu.get_tpu_info().vmem_capacity_bytes)
    except Exception:
        vmem_cap = 64 * 1024 * 1024
    vmem_limit = int(0.75 * vmem_cap)
    tile_budget = vmem_limit // 2                    # headroom for compiler scratch

    tm, tk = _choose_tiles(n_pad, d_pad, tile_budget)

    # Pad + per-row int8 quantization (entries of the normalized adjacency are >= 0).
    g_pad = np.zeros((n_pad, n_pad), np.float32)
    g_pad[:N, :N] = graph_np
    row_max = g_pad.max(axis=1, keepdims=True)
    q_step = np.where(row_max > 0, row_max / 127.0, 1.0).astype(np.float32)
    g_q = np.rint(g_pad / q_step).astype(np.int8)    # values in [0, 127]
    row_scale = np.where(row_max > 0, q_step, 0.0).astype(np.float32)

    # Block-sparse schedule: for each row tile, the list of nonzero k tiles.
    n_row, n_k = n_pad // tm, n_pad // tk
    nz = (np.abs(g_q.astype(np.int32)).reshape(n_row, tm, n_k, tk).max(axis=(1, 3)) > 0)
    counts = nz.sum(axis=1).astype(np.int32)
    max_k = max(int(counts.max()), 1)
    ids = np.zeros((n_row, max_k), np.int32)
    for i in range(n_row):
        ks = np.nonzero(nz[i])[0].astype(np.int32)
        if ks.size:
            ids[i, :ks.size] = ks
            ids[i, ks.size:] = ks[-1]                # repeat -> Pallas elides the DMA

    return dict(
        n_pad=n_pad, d_pad=d_pad, tm=tm, tk=tk, max_k=max_k,
        vmem_limit=vmem_limit, nz_tiles=int(counts.sum()),
        g_q=jnp.asarray(g_q), row_scale=jnp.asarray(row_scale),
        counts=jnp.asarray(counts), ids=jnp.asarray(ids.reshape(-1)),
    )


# ---------------------------------------------------------------------------
# Kernel 1: one LightGCN propagation layer
#   emb_{l+1} = G @ emb_l   (int8 G dequantized per-row, bf16 MXU, f32 acc)
#   acc_out   = acc_in + emb_{l+1} / (n_layers + 1)
# Grid = (row tiles ["parallel"], scheduled nonzero k tiles ["arbitrary"]).
# ---------------------------------------------------------------------------
def _layer_body(cnt_ref, ids_ref, g_ref, e_ref, scale_ref, acc_in_ref,
                e_out_ref, acc_out_ref, mm_ref, *, inv_scale, max_k):
    i = pl.program_id(0)
    j = pl.program_id(1)

    @pl.when(j == 0)
    def _init():
        mm_ref[...] = jnp.zeros_like(mm_ref)

    @pl.when(j < cnt_ref[i])                         # skip padded schedule slots
    def _accum():
        # int8 -> f32 -> bf16 converts (values <= 127 are exact in bf16).
        g_bf = g_ref[...].astype(jnp.float32).astype(jnp.bfloat16)
        mm_ref[...] += jnp.dot(g_bf, e_ref[...],
                               preferred_element_type=jnp.float32)

    @pl.when(j == max_k - 1)
    def _finalize():
        new_emb = mm_ref[...] * scale_ref[...]       # per-row int8 dequant
        if e_out_ref is not None:
            e_out_ref[...] = new_emb.astype(e_out_ref.dtype)
        acc_out_ref[...] = acc_in_ref[...] + new_emb * inv_scale


def _layer_kernel(cnt_ref, ids_ref, g_ref, e_ref, scale_ref, acc_in_ref,
                  e_out_ref, acc_out_ref, mm_ref, *, inv_scale, max_k):
    _layer_body(cnt_ref, ids_ref, g_ref, e_ref, scale_ref, acc_in_ref,
                e_out_ref, acc_out_ref, mm_ref, inv_scale=inv_scale, max_k=max_k)


def _layer_kernel_last(cnt_ref, ids_ref, g_ref, e_ref, scale_ref, acc_in_ref,
                       acc_out_ref, mm_ref, *, inv_scale, max_k):
    # Last layer: only the accumulated light_out is consumed; skip emb_L writeback.
    _layer_body(cnt_ref, ids_ref, g_ref, e_ref, scale_ref, acc_in_ref,
                None, acc_out_ref, mm_ref, inv_scale=inv_scale, max_k=max_k)


def _build_layer_call(plan, inv_scale, *, last):
    n_pad, d_pad = plan["n_pad"], plan["d_pad"]
    tm, tk, max_k = plan["tm"], plan["tk"], plan["max_k"]
    n_row = n_pad // tm

    def g_map(i, j, cnt, ids):                       # block-sparse G stream
        return (i, ids[i * max_k + j])

    def e_map(i, j, cnt, ids):                       # matching emb contraction tile
        return (ids[i * max_k + j], 0)

    def row_map(i, j, cnt, ids):                     # per-row-tile operands
        return (i, 0)

    in_specs = [
        pl.BlockSpec((tm, tk), g_map),               # int8 G tile
        pl.BlockSpec((tk, d_pad), e_map),            # bf16 emb_l tile
        pl.BlockSpec((tm, 1), row_map),              # per-row dequant scale
        pl.BlockSpec((tm, d_pad), row_map),          # running light_out acc (in)
    ]
    if last:
        kernel = partial(_layer_kernel_last, inv_scale=inv_scale, max_k=max_k)
        out_shape = jax.ShapeDtypeStruct((n_pad, d_pad), jnp.float32)
        out_specs = pl.BlockSpec((tm, d_pad), row_map)
        io_alias = {_NUM_SCALAR_PREFETCH + 3: 0}     # acc_in -> acc_out (in place)
    else:
        kernel = partial(_layer_kernel, inv_scale=inv_scale, max_k=max_k)
        out_shape = (jax.ShapeDtypeStruct((n_pad, d_pad), jnp.bfloat16),   # emb_{l+1}
                     jax.ShapeDtypeStruct((n_pad, d_pad), jnp.float32))    # acc out
        out_specs = [pl.BlockSpec((tm, d_pad), row_map),
                     pl.BlockSpec((tm, d_pad), row_map)]
        io_alias = {_NUM_SCALAR_PREFETCH + 3: 1}

    nz_tiles = int(plan["nz_tiles"])
    return pl.pallas_call(
        kernel,
        out_shape=out_shape,
        grid_spec=pltpu.PrefetchScalarGridSpec(
            num_scalar_prefetch=_NUM_SCALAR_PREFETCH,
            grid=(n_row, max_k),
            in_specs=in_specs,
            out_specs=out_specs,
            scratch_shapes=[pltpu.VMEM((tm, d_pad), jnp.float32)],
        ),
        compiler_params=pltpu.CompilerParams(
            dimension_semantics=("parallel", "arbitrary"),
            vmem_limit_bytes=plan["vmem_limit"],
        ),
        cost_estimate=pl.CostEstimate(
            flops=int(2 * nz_tiles * tm * tk * d_pad),
            transcendentals=0,
            bytes_accessed=int(nz_tiles * (tm * tk + tk * d_pad * 2)
                               + n_pad * d_pad * (4 + 4 + 2) + n_pad * 4),
        ),
        input_output_aliases=io_alias,
    )


def lightgcn_propagate(plan, emb_pad_f32, n_layers):
    """light_out = mean_{l=0..L} emb_l with emb_{l+1} = G @ emb_l (padded shapes)."""
    inv_scale = 1.0 / float(n_layers + 1)
    acc = emb_pad_f32 * inv_scale                    # layer-0 contribution (f32)
    if n_layers == 0:
        return acc
    emb_bf = emb_pad_f32.astype(jnp.bfloat16)
    args = (plan["counts"], plan["ids"], plan["g_q"])

    if n_layers > 1:
        full_call = _build_layer_call(plan, inv_scale, last=False)
        for _ in range(n_layers - 1):
            emb_bf, acc = full_call(*args, emb_bf, plan["row_scale"], acc)
    last_call = _build_layer_call(plan, inv_scale, last=True)
    acc = last_call(*args, emb_bf, plan["row_scale"], acc)
    return acc


# ---------------------------------------------------------------------------
# Kernel 2: forward() hot path -> gamma = sum(users_emb * items_emb, dim=1)
# Inputs are staged transposed (D, B_pad) in bf16 so the reduction is over
# sublanes and the output is a lane-dense (1, B_pad) row; reduce in f32.
# ---------------------------------------------------------------------------
def _gamma_kernel(u_ref, i_ref, out_ref):
    u = u_ref[...].astype(jnp.float32)
    v = i_ref[...].astype(jnp.float32)
    out_ref[...] = jnp.sum(u * v, axis=0, keepdims=True)


def gamma_pallas(users_emb, items_emb):
    B, D = users_emb.shape
    b_pad = _round_up(max(B, 1), 128)
    tb = min(512, b_pad)
    while b_pad % tb:
        tb -= 128
    # bf16 staging halves the wrapper HBM traffic; the reduction stays f32.
    # TODO(synk): at production batch sizes, an XLA-fused gather+mul+reduce (no
    #             Pallas staging round-trip) may be preferable for this path.
    u_t = jnp.zeros((D, b_pad), jnp.bfloat16).at[:, :B].set(
        users_emb.T.astype(jnp.bfloat16))
    i_t = jnp.zeros((D, b_pad), jnp.bfloat16).at[:, :B].set(
        items_emb.T.astype(jnp.bfloat16))

    out = pl.pallas_call(
        _gamma_kernel,
        out_shape=jax.ShapeDtypeStruct((1, b_pad), jnp.float32),
        grid_spec=pltpu.PrefetchScalarGridSpec(
            num_scalar_prefetch=0,
            grid=(b_pad // tb,),
            in_specs=[pl.BlockSpec((D, tb), lambda b: (0, b)),
                      pl.BlockSpec((D, tb), lambda b: (0, b))],
            out_specs=pl.BlockSpec((1, tb), lambda b: (0, b)),
        ),
        compiler_params=pltpu.CompilerParams(dimension_semantics=("parallel",)),
    )(u_t, i_t)
    return out[0, :B]


# ---------------------------------------------------------------------------
# LightGCN module in JAX (deterministic synthetic parameters / graph)
# ---------------------------------------------------------------------------
class LightGCNJax:
    def __init__(self, num_users, num_items, latent_dim, n_layers, key):
        self.num_users = num_users
        self.num_items = num_items
        self.latent_dim = latent_dim
        self.n_layers = n_layers

        k_u, k_i, k_g = jax.random.split(key, 3)
        # Xavier uniform (gain=1) like nn.init.xavier_uniform_
        lim_u = math.sqrt(6.0 / (num_users + latent_dim))
        lim_i = math.sqrt(6.0 / (num_items + latent_dim))
        self.embedding_user = jax.random.uniform(
            k_u, (num_users, latent_dim), jnp.float32, -lim_u, lim_u)
        self.embedding_item = jax.random.uniform(
            k_i, (num_items, latent_dim), jnp.float32, -lim_i, lim_i)

        # Synthetic symmetric-normalized bipartite adjacency (dense stand-in for
        # dataset.getSparseGraph()); f32 copy kept for the reference path.
        N = num_users + num_items
        R = (jax.random.uniform(k_g, (num_users, num_items)) < 0.15).astype(jnp.float32)
        A = jnp.zeros((N, N), jnp.float32)
        A = A.at[:num_users, num_users:].set(R)
        A = A.at[num_users:, :num_users].set(R.T)
        deg = jnp.sum(A, axis=1)
        d_inv_sqrt = jnp.where(deg > 0, 1.0 / jnp.sqrt(deg), 0.0)
        self.Graph = d_inv_sqrt[:, None] * A * d_inv_sqrt[None, :]

        # Kernel-side artifacts: padded int8 graph + per-row scales + the
        # block-sparse (row-tile -> nonzero k-tile) schedule and tile plan.
        self.plan = _make_propagation_plan(np.asarray(self.Graph), latent_dim)
        self.n_real = N
        # TODO(synk): sparse dropout (__dropout) and the A_split training path are
        #             not implemented; this is the eval / no-dropout path.

    def computer(self):
        all_emb = jnp.concatenate([self.embedding_user, self.embedding_item], axis=0)
        emb_pad = jnp.zeros((self.plan["n_pad"], self.plan["d_pad"]), jnp.float32)
        emb_pad = emb_pad.at[:self.n_real, :self.latent_dim].set(all_emb)
        light = lightgcn_propagate(self.plan, emb_pad, self.n_layers)
        light = light[:self.n_real, :self.latent_dim]
        return light[:self.num_users], light[self.num_users:]

    def forward(self, users, items):
        all_users, all_items = self.computer()
        users_emb = all_users[users]     # gather = glue, plain JAX
        items_emb = all_items[items]
        return gamma_pallas(users_emb, items_emb)

    # pure-f32 dense JAX reference for correctness checks
    def computer_ref(self):
        all_emb = jnp.concatenate([self.embedding_user, self.embedding_item], axis=0)
        embs = [all_emb]
        emb = all_emb
        for _ in range(self.n_layers):
            emb = self.Graph @ emb
            embs.append(emb)
        return jnp.mean(jnp.stack(embs, axis=1), axis=1)

    def forward_ref(self, users, items):
        light = self.computer_ref()
        u = light[:self.num_users][users]
        i = light[self.num_users:][items]
        return jnp.sum(u * i, axis=1)


if __name__ == "__main__":
    key = jax.random.PRNGKey(0)
    k_model, k_users, k_items = jax.random.split(key, 3)

    num_users, num_items = 192, 288      # N = 480 -> padded to 512 (exercises block-sparse schedule)
    latent_dim = 64                      # padded to 128 lanes inside the model
    n_layers = 3
    batch = 8

    model = LightGCNJax(num_users, num_items, latent_dim, n_layers, k_model)

    users = jax.random.randint(k_users, (batch,), 0, num_users, dtype=jnp.int32)
    items = jax.random.randint(k_items, (batch,), 0, num_items, dtype=jnp.int32)

    gamma = jax.block_until_ready(model.forward(users, items))
    assert gamma.shape == (batch,)

    # Propagation check: int8-quantized G + bf16 emb on the MXU vs f32 dense reference.
    users_k, items_k = model.computer()
    light_k = jnp.concatenate([users_k, items_k], axis=0)
    light_ref = model.computer_ref()
    rel = jnp.max(jnp.abs(light_k - light_ref)) / jnp.max(jnp.abs(light_ref))
    assert rel < 3e-2, rel

    gamma_ref = model.forward_ref(users, items)
    assert jnp.max(jnp.abs(gamma - gamma_ref)) < 5e-3, (gamma, gamma_ref)

    print("KERNEL_OK")
</pallas_src>

<mosaic_0001>
module attributes {stable_mosaic.version = 11 : i64} {
  func.func @_layer_kernel(%arg0: i32, %arg1: i32, %arg2: memref<2xi32, #tpu.memory_space<smem>>, %arg3: memref<4xi32, #tpu.memory_space<smem>>, %arg4: memref<256x256xi8, #tpu.memory_space<vmem>>, %arg5: memref<256x128xbf16, #tpu.memory_space<vmem>>, %arg6: memref<256x1xf32, #tpu.memory_space<vmem>>, %arg7: memref<256x128xf32, #tpu.memory_space<vmem>>, %arg8: memref<256x128xbf16, #tpu.memory_space<vmem>>, %arg9: memref<256x128xf32, #tpu.memory_space<vmem>>, %arg10: memref<256x128xf32, #tpu.memory_space<vmem>>) attributes {dimension_semantics = [#tpu.dimension_semantics<parallel>, #tpu.dimension_semantics<arbitrary>], iteration_bounds = array<i64: 2, 2>, scalar_prefetch = 2 : i64, scratch_operands = 1 : i64, tpu.core_type = #tpu.core_type<tc>, window_params = [{transform_indices = @transform_0, window_bounds = array<i64: 256, 256>}, {transform_indices = @transform_1, window_bounds = array<i64: 256, 128>}, {transform_indices = @transform_2, window_bounds = array<i64: 256, 1>}, {transform_indices = @transform_3, window_bounds = array<i64: 256, 128>}, {transform_indices = @transform_4, window_bounds = array<i64: 256, 128>}, {transform_indices = @transform_5, window_bounds = array<i64: 256, 128>}]} {
    %c0_i32 = arith.constant 0 : i32
    %0 = arith.cmpi eq, %arg1, %c0_i32 : i32
    %1 = arith.extui %0 : i1 to i32
    %c0_i32_0 = arith.constant 0 : i32
    %2 = arith.cmpi ne, %1, %c0_i32_0 : i32
    scf.if %2 {
      %cst = arith.constant 0.000000e+00 : f32
      %11 = vector.broadcast %cst : f32 to vector<256x128xf32>
      %c0 = arith.constant 0 : index
      %c0_3 = arith.constant 0 : index
      %12 = vector.load %arg10[%c0, %c0_3] : memref<256x128xf32, #tpu.memory_space<vmem>>, vector<256x128xf32>
      tpu.vector_store %arg10[%c0, %c0_3], %11 {strides = array<i32>} : memref<256x128xf32, #tpu.memory_space<vmem>>, vector<256x128xf32>,
    } else {
    }
    %3 = arith.index_cast %arg0 : i32 to index
    %4 = memref.load %arg2[%3] : memref<2xi32, #tpu.memory_space<smem>>
    %5 = arith.cmpi slt, %arg1, %4 : i32
    %6 = arith.extui %5 : i1 to i32
    %c0_i32_1 = arith.constant 0 : i32
    %7 = arith.cmpi ne, %6, %c0_i32_1 : i32
    scf.if %7 {
      %c0 = arith.constant 0 : index
      %c0_3 = arith.constant 0 : index
      %11 = vector.load %arg4[%c0, %c0_3] : memref<256x256xi8, #tpu.memory_space<vmem>>, vector<256x256xi8>
      %12 = arith.sitofp %11 : vector<256x256xi8> to vector<256x256xf32>
      %13 = arith.truncf %12 : vector<256x256xf32> to vector<256x256xbf16>
      %c0_4 = arith.constant 0 : index
      %c0_5 = arith.constant 0 : index
      %14 = vector.load %arg10[%c0_4, %c0_5] : memref<256x128xf32, #tpu.memory_space<vmem>>, vector<256x128xf32>
      %c0_6 = arith.constant 0 : index
      %c0_7 = arith.constant 0 : index
      %15 = vector.load %arg5[%c0_6, %c0_7] : memref<256x128xbf16, #tpu.memory_space<vmem>>, vector<256x128xbf16>
      %cst = arith.constant dense<0.000000e+00> : vector<256x128xf32>
      %16 = tpu.matmul %13, %15, %cst {dimension_numbers = #tpu.dot_dimension_numbers<[1], [0], [0], [1], [0, 0, 1, 1], [], []>} : vector<256x256xbf16>, vector<256x128xbf16>, vector<256x128xf32> -> vector<256x128xf32>
      %17 = arith.addf %14, %16 : vector<256x128xf32>
      %c0_8 = arith.constant 0 : index
      %c0_9 = arith.constant 0 : index
      %18 = vector.load %arg10[%c0_8, %c0_9] : memref<256x128xf32, #tpu.memory_space<vmem>>, vector<256x128xf32>
      tpu.vector_store %arg10[%c0_8, %c0_9], %17 {strides = array<i32>} : memref<256x128xf32, #tpu.memory_space<vmem>>, vector<256x128xf32>,
    } else {
    }
    %c1_i32 = arith.constant 1 : i32
    %8 = arith.cmpi eq, %arg1, %c1_i32 : i32
    %9 = arith.extui %8 : i1 to i32
    %c0_i32_2 = arith.constant 0 : i32
    %10 = arith.cmpi ne, %9, %c0_i32_2 : i32
    scf.if %10 {
      %c0 = arith.constant 0 : index
      %c0_3 = arith.constant 0 : index
      %11 = vector.load %arg10[%c0, %c0_3] : memref<256x128xf32, #tpu.memory_space<vmem>>, vector<256x128xf32>
      %c0_4 = arith.constant 0 : index
      %c0_5 = arith.constant 0 : index
      %12 = vector.load %arg6[%c0_4, %c0_5] : memref<256x1xf32, #tpu.memory_space<vmem>>, vector<256x1xf32>
      %13 = vector.broadcast %12 : vector<256x1xf32> to vector<256x128xf32>
      %14 = arith.mulf %11, %13 : vector<256x128xf32>
      %15 = arith.truncf %14 : vector<256x128xf32> to vector<256x128xbf16>
      %c0_6 = arith.constant 0 : index
      %c0_7 = arith.constant 0 : index
      %16 = vector.load %arg8[%c0_6, %c0_7] : memref<256x128xbf16, #tpu.memory_space<vmem>>, vector<256x128xbf16>
      tpu.vector_store %arg8[%c0_6, %c0_7], %15 {strides = array<i32>} : memref<256x128xbf16, #tpu.memory_space<vmem>>, vector<256x128xbf16>,
      %c0_8 = arith.constant 0 : index
      %c0_9 = arith.constant 0 : index
      %17 = vector.load %arg7[%c0_8, %c0_9] : memref<256x128xf32, #tpu.memory_space<vmem>>, vector<256x128xf32>
      %cst = arith.constant 2.500000e-01 : f32
      %18 = vector.broadcast %cst : f32 to vector<256x128xf32>
      %19 = arith.mulf %14, %18 : vector<256x128xf32>
      %20 = arith.addf %17, %19 : vector<256x128xf32>
      %c0_10 = arith.constant 0 : index
      %c0_11 = arith.constant 0 : index
      %21 = vector.load %arg9[%c0_10, %c0_11] : memref<256x128xf32, #tpu.memory_space<vmem>>, vector<256x128xf32>
      tpu.vector_store %arg9[%c0_10, %c0_11], %20 {strides = array<i32>} : memref<256x128xf32, #tpu.memory_space<vmem>>, vector<256x128xf32>,
    } else {
    }
    return
  }
  func.func @transform_0(%arg0: i32, %arg1: i32, %arg2: memref<2xi32, #tpu.memory_space<smem>>, %arg3: memref<4xi32, #tpu.memory_space<smem>>) -> (i32, i32) {
    %c2_i32 = arith.constant 2 : i32
    %0 = arith.muli %arg0, %c2_i32 : i32
    %1 = arith.addi %0, %arg1 : i32
    %2 = arith.index_cast %1 : i32 to index
    %3 = memref.load %arg3[%2] : memref<4xi32, #tpu.memory_space<smem>>
    %c0_i32 = arith.constant 0 : i32
    return %arg0, %3 : i32, i32
  }
  func.func @transform_1(%arg0: i32, %arg1: i32, %arg2: memref<2xi32, #tpu.memory_space<smem>>, %arg3: memref<4xi32, #tpu.memory_space<smem>>) -> (i32, i32) {
    %c2_i32 = arith.constant 2 : i32
    %0 = arith.muli %arg0, %c2_i32 : i32
    %1 = arith.addi %0, %arg1 : i32
    %2 = arith.index_cast %1 : i32 to index
    %3 = memref.load %arg3[%2] : memref<4xi32, #tpu.memory_space<smem>>
    %c0_i32 = arith.constant 0 : i32
    %c0_i32_0 = arith.constant 0 : i32
    return %3, %c0_i32 : i32, i32
  }
  func.func @transform_2(%arg0: i32, %arg1: i32, %arg2: memref<2xi32, #tpu.memory_space<smem>>, %arg3: memref<4xi32, #tpu.memory_space<smem>>) -> (i32, i32) {
    %c0_i32 = arith.constant 0 : i32
    %c0_i32_0 = arith.constant 0 : i32
    return %arg0, %c0_i32 : i32, i32
  }
  func.func @transform_3(%arg0: i32, %arg1: i32, %arg2: memref<2xi32, #tpu.memory_space<smem>>, %arg3: memref<4xi32, #tpu.memory_space<smem>>) -> (i32, i32) {
    %c0_i32 = arith.constant 0 : i32
    %c0_i32_0 = arith.constant 0 : i32
    return %arg0, %c0_i32 : i32, i32
  }
  func.func @transform_4(%arg0: i32, %arg1: i32, %arg2: memref<2xi32, #tpu.memory_space<smem>>, %arg3: memref<4xi32, #tpu.memory_space<smem>>) -> (i32, i32) {
    %c0_i32 = arith.constant 0 : i32
    %c0_i32_0 = arith.constant 0 : i32
    return %arg0, %c0_i32 : i32, i32
  }
  func.func @transform_5(%arg0: i32, %arg1: i32, %arg2: memref<2xi32, #tpu.memory_space<smem>>, %arg3: memref<4xi32, #tpu.memory_space<smem>>) -> (i32, i32) {
    %c0_i32 = arith.constant 0 : i32
    %c0_i32_0 = arith.constant 0 : i32
    return %arg0, %c0_i32 : i32, i32
  }
}

</mosaic_0001>

<llo_original>
// kernel: tpu_custom_call.1
$region0: #{tpu_custom_call.1}
  #allocation0 [shape = 'u32[]', space=smem, size = 0x4, offset = 0x4, fixed_abs, tag = 'smem constant byte address 0x4 - core index']
  #allocation1 [shape = 'u32[72,128]{1,0:T(1,128)}', space=vmem, size = 0x9000, scoped, tag = 'internal scratch']
  #allocation2 [shape = 'f32[256,128]{1,0:T(8,128)}', space=vmem, size = 0x20000, scoped, tag = 'scratch operand']
  #allocation3 [shape = 's32[1]{0}', space=sflag, size = 0x4, scoped, tag = 'scoped memory for tpu_custom_call.1']
  #allocation4 [shape = 'u8[512]{0}', space=smem, size = 0x200, scoped, tag = 'prefetched SMEM operand 0']
  #allocation5 [shape = 'u8[512]{0}', space=smem, size = 0x200, scoped, tag = 'prefetched SMEM operand 1']
  %s0 = inlined_call_operand.vmem [shape: s32[2], index: 0, kind: input, shape index: {}]
  %s1 = inlined_call_operand.vmem [shape: s32[4], index: 1, kind: input, shape index: {}]
  %s2 = inlined_call_operand.vmem [shape: s8[512,512], index: 2, kind: input, shape index: {}]
  %s3 = inlined_call_operand.vmem [shape: bf16[512,128], index: 3, kind: input, shape index: {}]
  %s4 = inlined_call_operand.vmem [shape: f32[512,1], index: 4, kind: input, shape index: {}]
  %s5 = inlined_call_operand.hbm [shape: f32[512,128], index: 5, kind: input, shape index: {}, may-alias: {5,7}]
  %s6 = inlined_call_operand.hbm [shape: bf16[512,128], index: 6, kind: output, shape index: {0}]
  %s7 = inlined_call_operand.hbm [shape: f32[512,128], index: 7, kind: output, shape index: {1}, may-alias: {5,7}]
  %8 = xla_tuple %s6, %s7
  %s9 = sld [smem:[#allocation0]]
  $region96: #{tpu_custom_call.1} parent=0
    _
  %s11 = ssub.s32 1, %s9
  %s12 = scalar_select 0, %s11, %s9
  %s14 = sshll.u32 %s0, 4
  %s15 = int_to_ptr.vmem [resolvable:$true] %s14
  %17 = dma.vmem_to_smem %s15, 16, [#allocation4], [#allocation3]
  %s19 = sshll.u32 %s1, 4
  %s20 = int_to_ptr.vmem [resolvable:$true] %s19
  %22 = dma.vmem_to_smem %s20, 16, [#allocation5], [#allocation3]
  %24 = dma.done [#allocation3], 32
  %25 = sfence
  $region1: #{tpu_custom_call.1} parent=0
    #allocation6 [shape = 'u8[131072]{0}', space=vmem, size = 0x20000, scoped, tag = 'input window, operand 2']
    #allocation7 [shape = 'u8[262144]{0}', space=vmem, size = 0x40000, scoped, tag = 'input window, operand 5']
    #allocation8 [shape = 's32[2]{0}', space=sflag, size = 0x8, scoped, tag = 'scoped memory for tpu_custom_call.1']
    #allocation9 [shape = 's32[2]{0}', space=sflag, size = 0x8, scoped, tag = 'scoped memory for tpu_custom_call.1']
    #allocation10 [shape = 'u8[131072]{0}', space=vmem, size = 0x20000, scoped, tag = 'output window, operand 0']
    #allocation11 [shape = 'u8[262144]{0}', space=vmem, size = 0x40000, scoped, tag = 'output window, operand 1']
    #allocation12 [shape = 's32[2]{0}', space=sflag, size = 0x8, scoped, tag = 'scoped memory for tpu_custom_call.1']
    %26 = vsyncpa [#allocation8], 0
    %s27 = scalar_lea.sflag [#allocation8], 1
    %28 = vsyncpa %s27, 0
    %29 = vsyncpa [#allocation9], 0
    %s30 = scalar_lea.sflag [#allocation9], 1
    %31 = vsyncpa %s30, 0
    %32 = vsyncpa [#allocation12], 0
    %s33 = scalar_lea.sflag [#allocation12], 1
    %34 = vsyncpa %s33, 0
    loop: start=0, step=1, limit=6
    $region2: #{tpu_custom_call.1} parent=1 // loop_pre_header
      _
    $region3: #{tpu_custom_call.1} parent=1 // loop_header
      %s36 = sphi 0, %s40
      %p37 = scmp.ge.s32.totalorder %s36, 6
      %s43 = sphi 0, %s55
      %s44 = sphi 0, %s51
      %s45 = sphi 0, %s43
      %s46 = sphi 0, %s44
      %s47 = sphi 0, %s45
      %s48 = sphi 0, %s46
      %s66 = sphi 0, %s68
      %s69 = sphi 0, %s66
      %s70 = sphi 0, %s69
      %s86 = sphi 0, %s70
      %s98 = sphi 0, %s100
      %s101 = sphi 0, %s98
      %s102 = sphi 0, %s101
      %s118 = sphi 0, %s102
      %s124 = sphi 0, %s126
      %s127 = sphi 0, %s124
      %s128 = sphi 0, %s127
      %s144 = sphi 0, %s128
      %s150 = sphi 0, %s152
      %s153 = sphi 0, %s150
      %s154 = sphi 0, %s153
      %s170 = sphi 0, %s154
      %s176 = sphi 0, %s178
      %s179 = sphi 0, %s176
      %s180 = sphi 0, %s179
      %s196 = sphi 0, %s180
      %s202 = sphi 0, %s204
      %s205 = sphi 0, %s202
      %s206 = sphi 0, %s205
      %s222 = sphi 0, %s206
    $region4: #{tpu_custom_call.1} parent=1 // loop_header_branch
      %39 = sbr.rel (%p37) target = $region8
    $region5: #{tpu_custom_call.1} parent=1 // loop_body
      %s41 = ssub.s32 %s36, 1
      %s42 = ssub.s32 %s36, 2
      %s49 = sadd.s32 1, %s44
      %p50 = scmp.ge.s32.totalorder %s49, 2
      %s51 = scalar_select %p50, 0, %s49
      %s52 = sadd.s32 1, %s43
      %s53 = scalar_select %p50, %s52, %s43
      %p54 = scmp.ge.s32.totalorder %s53, 2
      %s55 = scalar_select %p54, 0, %s53
      %s56 = smul.u32 %s43, 2
      %s57 = sadd.s32 %s56, %s44
      %s58 = sld [smem:[#allocation5 + %s57]]
      %s59 = smul.u32 %s55, 2
      %s60 = sadd.s32 %s59, %s51
      %s61 = sld [smem:[#allocation5 + %s60]]
      %s62 = ssub.s32 %s43, %s55
      %s63 = ssub.s32 %s58, %s61
      %s64 = sor.u32 %s62, %s63
      %p65 = scmp.eq.s32.totalorder %s64, 0
      %s67 = sadd.s32 %s66, 1
      %s68 = scalar_select %p65, %s66, %s67
      %p71 = pneg %p65
      %p72 = scmp.eq.s32.totalorder %s36, 3
      %p73 = por %p71, %p72
      %p74 = scmp.ne.s32.totalorder %s66, %s69
      %p75 = scmp.eq.s32.totalorder %s36, 0
      %p76 = por %p74, %p75
      %p77 = scmp.ne.s32.totalorder %s66, %s69
      %p78 = scmp.eq.s32.totalorder %s41, 3
      %p79 = por %p77, %p78
      %p80 = scmp.ne.s32.totalorder %s69, %s70
      %p81 = scmp.eq.s32.totalorder %s41, 0
      %p82 = por %p80, %p81
      %p83 = scmp.ne.s32.totalorder %s69, %s70
      %p84 = scmp.eq.s32.totalorder %s42, 3
      %p85 = por %p83, %p84
      %p87 = scmp.ne.s32.totalorder %s70, %s86
      %p88 = scmp.eq.s32.totalorder %s42, 0
      %p89 = por %p87, %p88
      %s90 = smul.u32 %s43, 2
      %s91 = sadd.s32 %s90, %s44
      %s92 = sld [smem:[#allocation5 + %s91]]
      %s93 = smul.u32 %s55, 2
      %s94 = sadd.s32 %s93, %s51
      %s95 = sld [smem:[#allocation5 + %s94]]
      %s96 = ssub.s32 %s92, %s95
      %p97 = scmp.eq.s32.totalorder %s96, 0
      %s99 = sadd.s32 %s98, 1
      %s100 = scalar_select %p97, %s98, %s99
      %p103 = pneg %p97
      %p104 = scmp.eq.s32.totalorder %s36, 3
      %p105 = por %p103, %p104
      %p106 = scmp.ne.s32.totalorder %s98, %s101
      %p107 = scmp.eq.s32.totalorder %s36, 0
      %p108 = por %p106, %p107
      %p109 = scmp.ne.s32.totalorder %s98, %s101
      %p110 = scmp.eq.s32.totalorder %s41, 3
      %p111 = por %p109, %p110
      %p112 = scmp.ne.s32.totalorder %s101, %s102
      %p113 = scmp.eq.s32.totalorder %s41, 0
      %p114 = por %p112, %p113
      %p115 = scmp.ne.s32.totalorder %s101, %s102
      %p116 = scmp.eq.s32.totalorder %s42, 3
      %p117 = por %p115, %p116
      %p119 = scmp.ne.s32.totalorder %s102, %s118
      %p120 = scmp.eq.s32.totalorder %s42, 0
      %p121 = por %p119, %p120
      %s122 = ssub.s32 %s43, %s55
      %p123 = scmp.eq.s32.totalorder %s122, 0
      %s125 = sadd.s32 %s124, 1
      %s126 = scalar_select %p123, %s124, %s125
      %p129 = pneg %p123
      %p130 = scmp.eq.s32.totalorder %s36, 3
      %p131 = por %p129, %p130
      %p132 = scmp.ne.s32.totalorder %s124, %s127
      %p133 = scmp.eq.s32.totalorder %s36, 0
      %p134 = por %p132, %p133
      %p135 = scmp.ne.s32.totalorder %s124, %s127
      %p136 = scmp.eq.s32.totalorder %s41, 3
      %p137 = por %p135, %p136
      %p138 = scmp.ne.s32.totalorder %s127, %s128
      %p139 = scmp.eq.s32.totalorder %s41, 0
      %p140 = por %p138, %p139
      %p141 = scmp.ne.s32.totalorder %s127, %s128
      %p142 = scmp.eq.s32.totalorder %s42, 3
      %p143 = por %p141, %p142
      %p145 = scmp.ne.s32.totalorder %s128, %s144
      %p146 = scmp.eq.s32.totalorder %s42, 0
      %p147 = por %p145, %p146
      %s148 = ssub.s32 %s43, %s55
      %p149 = scmp.eq.s32.totalorder %s148, 0
      %s151 = sadd.s32 %s150, 1
      %s152 = scalar_select %p149, %s150, %s151
      %p155 = pneg %p149
      %p156 = scmp.eq.s32.totalorder %s36, 3
      %p157 = por %p155, %p156
      %p158 = scmp.ne.s32.totalorder %s150, %s153
      %p159 = scmp.eq.s32.totalorder %s36, 0
      %p160 = por %p158, %p159
      %p161 = scmp.ne.s32.totalorder %s150, %s153
      %p162 = scmp.eq.s32.totalorder %s41, 3
      %p163 = por %p161, %p162
      %p164 = scmp.ne.s32.totalorder %s153, %s154
      %p165 = scmp.eq.s32.totalorder %s41, 0
      %p166 = por %p164, %p165
      %p167 = scmp.ne.s32.totalorder %s153, %s154
      %p168 = scmp.eq.s32.totalorder %s42, 3
      %p169 = por %p167, %p168
      %p171 = scmp.ne.s32.totalorder %s154, %s170
      %p172 = scmp.eq.s32.totalorder %s42, 0
      %p173 = por %p171, %p172
      %s174 = ssub.s32 %s43, %s55
      %p175 = scmp.eq.s32.totalorder %s174, 0
      %s177 = sadd.s32 %s176, 1
      %s178 = scalar_select %p175, %s176, %s177
      %p181 = pneg %p175
      %p182 = scmp.eq.s32.totalorder %s36, 3
      %p183 = por %p181, %p182
      %p184 = scmp.ne.s32.totalorder %s176, %s179
      %p185 = scmp.eq.s32.totalorder %s36, 0
      %p186 = por %p184, %p185
      %p187 = scmp.ne.s32.totalorder %s176, %s179
      %p188 = scmp.eq.s32.totalorder %s41, 3
      %p189 = por %p187, %p188
      %p190 = scmp.ne.s32.totalorder %s179, %s180
      %p191 = scmp.eq.s32.totalorder %s41, 0
      %p192 = por %p190, %p191
      %p193 = scmp.ne.s32.totalorder %s179, %s180
      %p194 = scmp.eq.s32.totalorder %s42, 3
      %p195 = por %p193, %p194
      %p197 = scmp.ne.s32.totalorder %s180, %s196
      %p198 = scmp.eq.s32.totalorder %s42, 0
      %p199 = por %p197, %p198
      %s200 = ssub.s32 %s43, %s55
      %p201 = scmp.eq.s32.totalorder %s200, 0
      %s203 = sadd.s32 %s202, 1
      %s204 = scalar_select %p201, %s202, %s203
      %p207 = pneg %p201
      %p208 = scmp.eq.s32.totalorder %s36, 3
      %p209 = por %p207, %p208
      %p210 = scmp.ne.s32.totalorder %s202, %s205
      %p211 = scmp.eq.s32.totalorder %s36, 0
      %p212 = por %p210, %p211
      %p213 = scmp.ne.s32.totalorder %s202, %s205
      %p214 = scmp.eq.s32.totalorder %s41, 3
      %p215 = por %p213, %p214
      %p216 = scmp.ne.s32.totalorder %s205, %s206
      %p217 = scmp.eq.s32.totalorder %s41, 0
      %p218 = por %p216, %p217
      %p219 = scmp.ne.s32.totalorder %s205, %s206
      %p220 = scmp.eq.s32.totalorder %s42, 3
      %p221 = por %p219, %p220
      %p223 = scmp.ne.s32.totalorder %s206, %s222
      %p224 = scmp.eq.s32.totalorder %s42, 0
      %p225 = por %p223, %p224
      %p226 = scmp.le.s32.totalorder 1, %s36
      %p227 = scmp.lt.s32.totalorder %s36, 5
      %p228 = pnand %p226, %p227
      %p229 = pneg %p228
      // Predicated region
      $region9: #{tpu_custom_call.1} parent=5 // pred_check
        _
      $region10: #{tpu_custom_call.1} parent=5 // pred_check_branch
        %231 = sbr.rel (%p228) target = $region12
      $region11: #{tpu_custom_call.1} parent=5 // pred_region
        %s232 = ssub.s32 %s36, 1
      $region12: #{tpu_custom_call.1} parent=5 // pred_fallthru
        _
      %p233 = scmp.lt.s32.totalorder %s36, 4
      // Predicated region
      $region13: #{tpu_custom_call.1} parent=5 // pred_check
        %p234 = pneg %p233
      $region14: #{tpu_custom_call.1} parent=5 // pred_check_branch
        %236 = sbr.rel (%p234) target = $region16
      $region15: #{tpu_custom_call.1} parent=5 // pred_region
        // Predicated region
        $region17: #{tpu_custom_call.1} parent=15 // pred_check
          %p237 = pneg %p76
        $region18: #{tpu_custom_call.1} parent=15 // pred_check_branch
          %239 = sbr.rel (%p237) target = $region20
        $region19: #{tpu_custom_call.1} parent=15 // pred_region
          %s240 = sand.u32 %s66, 1
          %s241 = sand.u32 %s66, 1
          %s242 = smul.addr %s241, 128
          %s243 = scalar_lea.vmem [#allocation6], %s242
          %s244 = smul.u32 %s43, 2
          %s245 = sadd.s32 %s244, %s44
          %s246 = sld [smem:[#allocation5 + %s245]]
          %s247 = smul.u32 8, %s43
          %s248 = smul.u32 2, %s246
          %s249 = smul.addr %s247, 4
          %s250 = sadd.s32 %s248, %s249
          %s251 = smul.addr %s250, 8
          %s252 = scalar_lea.vmem %s2, %s251
          // Predicated region
          $region21: #{tpu_custom_call.1} parent=19 // pred_check
            _
          $region22: #{tpu_custom_call.1} parent=19 // pred_check_branch
            %254 = sbr.rel (0) target = $region24
          $region23: #{tpu_custom_call.1} parent=19 // pred_region
            // Predicated region
            $region25: #{tpu_custom_call.1} parent=23 // pred_check
              _
            $region26: #{tpu_custom_call.1} parent=23 // pred_check_branch
              %256 = sbr.rel (0) target = $region28
            $region27: #{tpu_custom_call.1} parent=23 // pred_region
              loop: start=0, step=1, limit=1
              $region29: #{tpu_custom_call.1} parent=27 // loop_pre_header
                _
              $region30: #{tpu_custom_call.1} parent=27 // loop_header
                %s258 = sphi 0, %s262
                %p259 = scmp.ge.s32.totalorder %s258, 1
                %s263 = sphi %s252, %s252
                %s264 = sphi %s243, %s243
              $region31: #{tpu_custom_call.1} parent=27 // loop_header_branch
                %261 = sbr.rel (%p259) target = $region35
              $region32: #{tpu_custom_call.1} parent=27 // loop_body
                %v265 = vld [vmem:[%s263] sm:$0xff]
                %266 = vst [vmem:[%s264] sm:$0xff] %v265
                %v267 = vld [vmem:[%s263 + $0x8] sm:$0xff]
                %268 = vst [vmem:[%s264 + $0x8] sm:$0xff] %v267
                %v269 = vld [vmem:[%s263 + $0x20] sm:$0xff]
                %270 = vst [vmem:[%s264 + $0x10] sm:$0xff] %v269
                %v271 = vld [vmem:[%s263 + $0x28] sm:$0xff]
                %272 = vst [vmem:[%s264 + $0x18] sm:$0xff] %v271
                %v273 = vld [vmem:[%s263 + $0x40] sm:$0xff]
                %274 = vst [vmem:[%s264 + $0x20] sm:$0xff] %v273
                %v275 = vld [vmem:[%s263 + $0x48] sm:$0xff]
                %276 = vst [vmem:[%s264 + $0x28] sm:$0xff] %v275
                %v277 = vld [vmem:[%s263 + $0x60] sm:$0xff]
                %278 = vst [vmem:[%s264 + $0x30] sm:$0xff] %v277
                %v279 = vld [vmem:[%s263 + $0x68] sm:$0xff]
                %280 = vst [vmem:[%s264 + $0x38] sm:$0xff] %v279
                %v281 = vld [vmem:[%s263 + $0x80] sm:$0xff]
                %282 = vst [vmem:[%s264 + $0x40] sm:$0xff] %v281
                %v283 = vld [vmem:[%s263 + $0x88] sm:$0xff]
                %284 = vst [vmem:[%s264 + $0x48] sm:$0xff] %v283
                %v285 = vld [vmem:[%s263 + $0xa0] sm:$0xff]
                %286 = vst [vmem:[%s264 + $0x50] sm:$0xff] %v285
                %v287 = vld [vmem:[%s263 + $0xa8] sm:$0xff]
                %288 = vst [vmem:[%s264 + $0x58] sm:$0xff] %v287
                %v289 = vld [vmem:[%s263 + $0xc0] sm:$0xff]
                %290 = vst [vmem:[%s264 + $0x60] sm:$0xff] %v289
                %v291 = vld [vmem:[%s263 + $0xc8] sm:$0xff]
                %292 = vst [vmem:[%s264 + $0x68] sm:$0xff] %v291
                %v293 = vld [vmem:[%s263 + $0xe0] sm:$0xff]
                %294 = vst [vmem:[%s264 + $0x70] sm:$0xff] %v293
                %v295 = vld [vmem:[%s263 + $0xe8] sm:$0xff]
                %296 = vst [vmem:[%s264 + $0x78] sm:$0xff] %v295
              $region33: #{tpu_custom_call.1} parent=27 // loop_footer
                %s262 = sadd.s32 1, %s258
              $region34: #{tpu_custom_call.1} parent=27 // loop_footer_branch
                %257 = sbr.rel target = $region30
              $region35: #{tpu_custom_call.1} parent=27 // loop_exit
                _
            $region28: #{tpu_custom_call.1} parent=23 // pred_fallthru
              _
            // Predicated region
            $region36: #{tpu_custom_call.1} parent=23 // pred_check
              _
            $region37: #{tpu_custom_call.1} parent=23 // pred_check_branch
              %298 = sbr.rel target = $region39
            $region38: #{tpu_custom_call.1} parent=23 // pred_region
              _
            $region39: #{tpu_custom_call.1} parent=23 // pred_fallthru
              _
          $region24: #{tpu_custom_call.1} parent=19 // pred_fallthru
            _
          %299 = vnop
        $region20: #{tpu_custom_call.1} parent=15 // pred_fallthru
          _
        // Predicated region
        $region40: #{tpu_custom_call.1} parent=15 // pred_check
          %p300 = pneg %p108
        $region41: #{tpu_custom_call.1} parent=15 // pred_check_branch
          %302 = sbr.rel (%p300) target = $region43
        $region42: #{tpu_custom_call.1} parent=15 // pred_region
          %s303 = smul.u32 %s43, 2
          %s304 = sadd.s32 %s303, %s44
          %s305 = sld [smem:[#allocation5 + %s304]]
          %s306 = smul.u32 32, %s305
          %p307 = scmp.lt.s32.totalorder %s306, 63
          %s308 = scalar_select %p307, %s306, 63
          %s309 = smul.addr %s308, 4
          %s310 = scalar_lea.vmem %s3, %s309
          %s311 = smul.u32 %s43, 2
          %s312 = sadd.s32 %s311, %s44
          %s313 = sld [smem:[#allocation5 + %s312]]
          %s314 = smul.u32 32, %s313
        $region43: #{tpu_custom_call.1} parent=15 // pred_fallthru
          _
        // Predicated region
        $region44: #{tpu_custom_call.1} parent=15 // pred_check
          %p315 = pneg %p134
        $region45: #{tpu_custom_call.1} parent=15 // pred_check_branch
          %317 = sbr.rel (%p315) target = $region47
        $region46: #{tpu_custom_call.1} parent=15 // pred_region
          %s318 = smul.u32 32, %s43
          %p319 = scmp.lt.s32.totalorder %s318, 63
          %s320 = scalar_select %p319, %s318, 63
          %s321 = smul.addr %s320, 8
          %s322 = scalar_lea.vmem %s4, %s321
          %s323 = smul.u32 32, %s43
        $region47: #{tpu_custom_call.1} parent=15 // pred_fallthru
          _
        // Predicated region
        $region48: #{tpu_custom_call.1} parent=15 // pred_check
          %p324 = pneg %p160
        $region49: #{tpu_custom_call.1} parent=15 // pred_check_branch
          %326 = sbr.rel (%p324) target = $region51
        $region50: #{tpu_custom_call.1} parent=15 // pred_region
          %s327 = sand.u32 %s150, 1
          %s328 = scalar_lea.sflag [#allocation8], %s327
          %s329 = sand.u32 %s150, 1
          %s330 = smul.addr %s329, 256
          %s331 = scalar_lea.vmem [#allocation7], %s330
          %s332 = smul.u32 32, %s43
          %334 = vsyncadd %s328, 0
          %s335 = smul.addr %s332, 8
          %s336 = scalar_lea.hbm %s5, %s335
          %s337 = sshll.u32 %s336, 4
          %s338 = int_to_ptr.hbm [resolvable:$true] %s337
          %s339 = sshll.u32 %s331, 4
          %s340 = int_to_ptr.vmem [resolvable:$true] %s339
          %345 = dma.hbm_to_vmem [thread:$0]  %s338, 4096, %s340, %s328, 128, 128, 8
        $region51: #{tpu_custom_call.1} parent=15 // pred_fallthru
          _
      $region16: #{tpu_custom_call.1} parent=5 // pred_fallthru
        _
      %p346 = scmp.le.s32.totalorder 1, %s36
      %p347 = scmp.lt.s32.totalorder %s36, 5
      %p348 = pnand %p346, %p347
      %p349 = pneg %p348
      // Predicated region
      $region52: #{tpu_custom_call.1} parent=5 // pred_check
        _
      $region53: #{tpu_custom_call.1} parent=5 // pred_check_branch
        %351 = sbr.rel (%p348) target = $region55
      $region54: #{tpu_custom_call.1} parent=5 // pred_region
        %s352 = ssub.s32 %s36, 1
        %s353 = sand.u32 %s69, 1
        %s354 = sand.u32 %s69, 1
        %s355 = smul.addr %s354, 128
        %s356 = scalar_lea.vmem [#allocation6], %s355
        // Predicated region
        $region56: #{tpu_custom_call.1} parent=54 // pred_check
          %p357 = pneg %p82
        $region57: #{tpu_custom_call.1} parent=54 // pred_check_branch
          %359 = sbr.rel (%p357) target = $region59
        $region58: #{tpu_custom_call.1} parent=54 // pred_region
          _
        $region59: #{tpu_custom_call.1} parent=54 // pred_fallthru
          _
        %s360 = sand.u32 %s153, 1
        %s361 = scalar_lea.sflag [#allocation8], %s360
        %s362 = sand.u32 %s153, 1
        %s363 = smul.addr %s362, 256
        %s364 = scalar_lea.vmem [#allocation7], %s363
        // Predicated region
        $region60: #{tpu_custom_call.1} parent=54 // pred_check
          %p365 = pneg %p166
        $region61: #{tpu_custom_call.1} parent=54 // pred_check_branch
          %367 = sbr.rel (%p365) target = $region63
        $region62: #{tpu_custom_call.1} parent=54 // pred_region
          %369 = dma.done %s361, 4096
        $region63: #{tpu_custom_call.1} parent=54 // pred_fallthru
          _
        %s370 = sand.u32 %s69, 1
        %s371 = sand.u32 %s69, 1
        %s372 = smul.addr %s371, 128
        %s373 = scalar_lea.vmem [#allocation6], %s372
        %p374 = pneg %p82
        %p375 = pneg %p79
        %s376 = smul.u32 %s45, 2
        %s377 = sadd.s32 %s376, %s46
        %s378 = sld [smem:[#allocation5 + %s377]]
        %s379 = smul.u32 32, %s378
        %p380 = scmp.lt.s32.totalorder %s379, 63
        %s381 = scalar_select %p380, %s379, 63
        %s382 = smul.addr %s381, 4
        %s383 = scalar_lea.vmem %s3, %s382
        %p384 = pneg %p114
        %p385 = pneg %p111
        %s386 = smul.u32 32, %s45
        %p387 = scmp.lt.s32.totalorder %s386, 63
        %s388 = scalar_select %p387, %s386, 63
        %s389 = smul.addr %s388, 8
        %s390 = scalar_lea.vmem %s4, %s389
        %p391 = pneg %p140
        %p392 = pneg %p137
        %s393 = sand.u32 %s153, 1
        %s394 = scalar_lea.sflag [#allocation8], %s393
        %s395 = sand.u32 %s153, 1
        %s396 = smul.addr %s395, 256
        %s397 = scalar_lea.vmem [#allocation7], %s396
        %p398 = pneg %p166
        %p399 = pneg %p163
        %p400 = pneg %p192
        %p401 = pneg %p189
        %s402 = sand.u32 %s179, 1
        %s403 = scalar_lea.sflag [#allocation9], %s402
        %s404 = sand.u32 %s179, 1
        %s405 = smul.addr %s404, 128
        %s406 = scalar_lea.vmem [#allocation10], %s405
        %p407 = pneg %p218
        %p408 = pneg %p215
        %s409 = sand.u32 %s205, 1
        %s410 = scalar_lea.sflag [#allocation12], %s409
        %s411 = sand.u32 %s205, 1
        %s412 = smul.addr %s411, 256
        %s413 = scalar_lea.vmem [#allocation11], %s412
        %s414 = smul.u32 %s45, 2
        %s415 = sadd.s32 %s414, %s46
        %s416 = sld [smem:[#allocation5 + %s415]]
        %s417 = smul.u32 8, %s45
        %s418 = smul.u32 2, %s416
        %s419 = smul.u32 %s45, 2
        %s420 = sadd.s32 %s419, %s46
        %s421 = sld [smem:[#allocation5 + %s420]]
        %s422 = smul.u32 32, %s421
        %p423 = scmp.lt.s32.totalorder %s422, 63
        %s424 = scalar_select %p423, %s422, 63
        %s425 = smul.addr %s424, 4
        %s426 = scalar_lea.vmem %s3, %s425
        %s427 = smul.u32 %s45, 2
        %s428 = sadd.s32 %s427, %s46
        %s429 = sld [smem:[#allocation5 + %s428]]
        %s430 = smul.u32 32, %s429
        %s431 = smul.u32 32, %s45
        %p432 = scmp.lt.s32.totalorder %s431, 63
        %s433 = scalar_select %p432, %s431, 63
        %s434 = smul.addr %s433, 8
        %s435 = scalar_lea.vmem %s4, %s434
        %s436 = smul.u32 32, %s45
        %s437 = smul.u32 32, %s45
        %s438 = smul.u32 32, %s45
        %s439 = smul.u32 32, %s45
        %p440 = scmp.eq.s32.totalorder %s46, 0
        // Predicated region
        $region64: #{tpu_custom_call.1} parent=54 // pred_check
          %p441 = pneg %p440
        $region65: #{tpu_custom_call.1} parent=54 // pred_check_branch
          %443 = sbr.rel (%p441) target = $region67
        $region66: #{tpu_custom_call.1} parent=54 // pred_region
          %444 = vst [vmem:[#allocation2] sm:$0xff] 0.0
          %445 = vst [vmem:[#allocation2 + $0x8] sm:$0xff] 0.0
          %446 = vst [vmem:[#allocation2 + $0x10] sm:$0xff] 0.0
          %447 = vst [vmem:[#allocation2 + $0x18] sm:$0xff] 0.0
          %448 = vst [vmem:[#allocation2 + $0x20] sm:$0xff] 0.0
          %449 = vst [vmem:[#allocation2 + $0x28] sm:$0xff] 0.0
          %450 = vst [vmem:[#allocation2 + $0x30] sm:$0xff] 0.0
          %451 = vst [vmem:[#allocation2 + $0x38] sm:$0xff] 0.0
          %452 = vst [vmem:[#allocation2 + $0x40] sm:$0xff] 0.0
          %453 = vst [vmem:[#allocation2 + $0x48] sm:$0xff] 0.0
          %454 = vst [vmem:[#allocation2 + $0x50] sm:$0xff] 0.0
          %455 = vst [vmem:[#allocation2 + $0x58] sm:$0xff] 0.0
          %456 = vst [vmem:[#allocation2 + $0x60] sm:$0xff] 0.0
          %457 = vst [vmem:[#allocation2 + $0x68] sm:$0xff] 0.0
          %458 = vst [vmem:[#allocation2 + $0x70] sm:$0xff] 0.0
          %459 = vst [vmem:[#allocation2 + $0x78] sm:$0xff] 0.0
          %460 = vst [vmem:[#allocation2 + $0x80] sm:$0xff] 0.0
          %461 = vst [vmem:[#allocation2 + $0x88] sm:$0xff] 0.0
          %462 = vst [vmem:[#allocation2 + $0x90] sm:$0xff] 0.0
          %463 = vst [vmem:[#allocation2 + $0x98] sm:$0xff] 0.0
          %464 = vst [vmem:[#allocation2 + $0xa0] sm:$0xff] 0.0
          %465 = vst [vmem:[#allocation2 + $0xa8] sm:$0xff] 0.0
          %466 = vst [vmem:[#allocation2 + $0xb0] sm:$0xff] 0.0
          %467 = vst [vmem:[#allocation2 + $0xb8] sm:$0xff] 0.0
          %468 = vst [vmem:[#allocation2 + $0xc0] sm:$0xff] 0.0
          %469 = vst [vmem:[#allocation2 + $0xc8] sm:$0xff] 0.0
          %470 = vst [vmem:[#allocation2 + $0xd0] sm:$0xff] 0.0
          %471 = vst [vmem:[#allocation2 + $0xd8] sm:$0xff] 0.0
          %472 = vst [vmem:[#allocation2 + $0xe0] sm:$0xff] 0.0
          %473 = vst [vmem:[#allocation2 + $0xe8] sm:$0xff] 0.0
          %474 = vst [vmem:[#allocation2 + $0xf0] sm:$0xff] 0.0
          %475 = vst [vmem:[#allocation2 + $0xf8] sm:$0xff] 0.0
        $region67: #{tpu_custom_call.1} parent=54 // pred_fallthru
          _
        %s476 = sld [smem:[#allocation4 + %s45]]
        %p477 = scmp.lt.s32.totalorder %s46, %s476
        // Predicated region
        $region68: #{tpu_custom_call.1} parent=54 // pred_check
          %p478 = pneg %p477
        $region69: #{tpu_custom_call.1} parent=54 // pred_check_branch
          %480 = sbr.rel (%p478) target = $region71
        $region70: #{tpu_custom_call.1} parent=54 // pred_region
          %v481 = vld [vmem:[%s356] sm:$0xff]
          %v482 = vld [vmem:[%s356 + $0x8] sm:$0xff]
          %v483 = vld [vmem:[%s356 + $0x10] sm:$0xff]
          %v484 = vld [vmem:[%s356 + $0x18] sm:$0xff]
          %v485 = vld [vmem:[%s356 + $0x20] sm:$0xff]
          %v486 = vld [vmem:[%s356 + $0x28] sm:$0xff]
          %v487 = vld [vmem:[%s356 + $0x30] sm:$0xff]
          %v488 = vld [vmem:[%s356 + $0x38] sm:$0xff]
          %v489 = vld [vmem:[%s356 + $0x40] sm:$0xff]
          %v490 = vld [vmem:[%s356 + $0x48] sm:$0xff]
          %v491 = vld [vmem:[%s356 + $0x50] sm:$0xff]
          %v492 = vld [vmem:[%s356 + $0x58] sm:$0xff]
          %v493 = vld [vmem:[%s356 + $0x60] sm:$0xff]
          %v494 = vld [vmem:[%s356 + $0x68] sm:$0xff]
          %v495 = vld [vmem:[%s356 + $0x70] sm:$0xff]
          %v496 = vld [vmem:[%s356 + $0x78] sm:$0xff]
          %v497 = vunpack.c.0.s8 %v481
          %v498 = vunpack.c.0.s8 %v482
          %v499 = vunpack.c.1.s8 %v481
          %v500 = vunpack.c.1.s8 %v482
          %v501 = vunpack.c.2.s8 %v481
          %v502 = vunpack.c.2.s8 %v482
          %v503 = vunpack.c.3.s8 %v481
          %v504 = vunpack.c.3.s8 %v482
          %v505 = vunpack.c.0.s8 %v483
          %v506 = vunpack.c.0.s8 %v484
          %v507 = vunpack.c.1.s8 %v483
          %v508 = vunpack.c.1.s8 %v484
          %v509 = vunpack.c.2.s8 %v483
          %v510 = vunpack.c.2.s8 %v484
          %v511 = vunpack.c.3.s8 %v483
          %v512 = vunpack.c.3.s8 %v484
          %v513 = vunpack.c.0.s8 %v485
          %v514 = vunpack.c.0.s8 %v486
          %v515 = vunpack.c.1.s8 %v485
          %v516 = vunpack.c.1.s8 %v486
          %v517 = vunpack.c.2.s8 %v485
          %v518 = vunpack.c.2.s8 %v486
          %v519 = vunpack.c.3.s8 %v485
          %v520 = vunpack.c.3.s8 %v486
          %v521 = vunpack.c.0.s8 %v487
          %v522 = vunpack.c.0.s8 %v488
          %v523 = vunpack.c.1.s8 %v487
          %v524 = vunpack.c.1.s8 %v488
          %v525 = vunpack.c.2.s8 %v487
          %v526 = vunpack.c.2.s8 %v488
          %v527 = vunpack.c.3.s8 %v487
          %v528 = vunpack.c.3.s8 %v488
          %v529 = vunpack.c.0.s8 %v489
          %v530 = vunpack.c.0.s8 %v490
          %v531 = vunpack.c.1.s8 %v489
          %v532 = vunpack.c.1.s8 %v490
          %v533 = vunpack.c.2.s8 %v489
          %v534 = vunpack.c.2.s8 %v490
          %v535 = vunpack.c.3.s8 %v489
          %v536 = vunpack.c.3.s8 %v490
          %v537 = vunpack.c.0.s8 %v491
          %v538 = vunpack.c.0.s8 %v492
          %v539 = vunpack.c.1.s8 %v491
          %v540 = vunpack.c.1.s8 %v492
          %v541 = vunpack.c.2.s8 %v491
          %v542 = vunpack.c.2.s8 %v492
          %v543 = vunpack.c.3.s8 %v491
          %v544 = vunpack.c.3.s8 %v492
          %v545 = vunpack.c.0.s8 %v493
          %v546 = vunpack.c.0.s8 %v494
          %v547 = vunpack.c.1.s8 %v493
          %v548 = vunpack.c.1.s8 %v494
          %v549 = vunpack.c.2.s8 %v493
          %v550 = vunpack.c.2.s8 %v494
          %v551 = vunpack.c.3.s8 %v493
          %v552 = vunpack.c.3.s8 %v494
          %v553 = vunpack.c.0.s8 %v495
          %v554 = vunpack.c.0.s8 %v496
          %v555 = vunpack.c.1.s8 %v495
          %v556 = vunpack.c.1.s8 %v496
          %v557 = vunpack.c.2.s8 %v495
          %v558 = vunpack.c.2.s8 %v496
          %v559 = vunpack.c.3.s8 %v495
          %v560 = vunpack.c.3.s8 %v496
          %v561 = vcvt.s32.f32 %v497
          %v562 = vcvt.s32.f32 %v498
          %v563 = vcvt.s32.f32 %v499
          %v564 = vcvt.s32.f32 %v500
          %v565 = vcvt.s32.f32 %v501
          %v566 = vcvt.s32.f32 %v502
          %v567 = vcvt.s32.f32 %v503
          %v568 = vcvt.s32.f32 %v504
          %v569 = vcvt.s32.f32 %v505
          %v570 = vcvt.s32.f32 %v506
          %v571 = vcvt.s32.f32 %v507
          %v572 = vcvt.s32.f32 %v508
          %v573 = vcvt.s32.f32 %v509
          %v574 = vcvt.s32.f32 %v510
          %v575 = vcvt.s32.f32 %v511
          %v576 = vcvt.s32.f32 %v512
          %v577 = vcvt.s32.f32 %v513
          %v578 = vcvt.s32.f32 %v514
          %v579 = vcvt.s32.f32 %v515
          %v580 = vcvt.s32.f32 %v516
          %v581 = vcvt.s32.f32 %v517
          %v582 = vcvt.s32.f32 %v518
          %v583 = vcvt.s32.f32 %v519
          %v584 = vcvt.s32.f32 %v520
          %v585 = vcvt.s32.f32 %v521
          %v586 = vcvt.s32.f32 %v522
          %v587 = vcvt.s32.f32 %v523
          %v588 = vcvt.s32.f32 %v524
          %v589 = vcvt.s32.f32 %v525
          %v590 = vcvt.s32.f32 %v526
          %v591 = vcvt.s32.f32 %v527
          %v592 = vcvt.s32.f32 %v528
          %v593 = vcvt.s32.f32 %v529
          %v594 = vcvt.s32.f32 %v530
          %v595 = vcvt.s32.f32 %v531
          %v596 = vcvt.s32.f32 %v532
          %v597 = vcvt.s32.f32 %v533
          %v598 = vcvt.s32.f32 %v534
          %v599 = vcvt.s32.f32 %v535
          %v600 = vcvt.s32.f32 %v536
          %v601 = vcvt.s32.f32 %v537
          %v602 = vcvt.s32.f32 %v538
          %v603 = vcvt.s32.f32 %v539
          %v604 = vcvt.s32.f32 %v540
          %v605 = vcvt.s32.f32 %v541
          %v606 = vcvt.s32.f32 %v542
          %v607 = vcvt.s32.f32 %v543
          %v608 = vcvt.s32.f32 %v544
          %v609 = vcvt.s32.f32 %v545
          %v610 = vcvt.s32.f32 %v546
          %v611 = vcvt.s32.f32 %v547
          %v612 = vcvt.s32.f32 %v548
          %v613 = vcvt.s32.f32 %v549
          %v614 = vcvt.s32.f32 %v550
          %v615 = vcvt.s32.f32 %v551
          %v616 = vcvt.s32.f32 %v552
          %v617 = vcvt.s32.f32 %v553
          %v618 = vcvt.s32.f32 %v554
          %v619 = vcvt.s32.f32 %v555
          %v620 = vcvt.s32.f32 %v556
          %v621 = vcvt.s32.f32 %v557
          %v622 = vcvt.s32.f32 %v558
          %v623 = vcvt.s32.f32 %v559
          %v624 = vcvt.s32.f32 %v560
          %v625 = vpack.c.bf16 %v563, %v561
          %v626 = vpack.c.bf16 %v564, %v562
          %v627 = vpack.c.bf16 %v567, %v565
          %v628 = vpack.c.bf16 %v568, %v566
          %v629 = vpack.c.bf16 %v571, %v569
          %v630 = vpack.c.bf16 %v572, %v570
          %v631 = vpack.c.bf16 %v575, %v573
          %v632 = vpack.c.bf16 %v576, %v574
          %v633 = vpack.c.bf16 %v579, %v577
          %v634 = vpack.c.bf16 %v580, %v578
          %v635 = vpack.c.bf16 %v583, %v581
          %v636 = vpack.c.bf16 %v584, %v582
          %v637 = vpack.c.bf16 %v587, %v585
          %v638 = vpack.c.bf16 %v588, %v586
          %v639 = vpack.c.bf16 %v591, %v589
          %v640 = vpack.c.bf16 %v592, %v590
          %v641 = vpack.c.bf16 %v595, %v593
          %v642 = vpack.c.bf16 %v596, %v594
          %v643 = vpack.c.bf16 %v599, %v597
          %v644 = vpack.c.bf16 %v600, %v598
          %v645 = vpack.c.bf16 %v603, %v601
          %v646 = vpack.c.bf16 %v604, %v602
          %v647 = vpack.c.bf16 %v607, %v605
          %v648 = vpack.c.bf16 %v608, %v606
          %v649 = vpack.c.bf16 %v611, %v609
          %v650 = vpack.c.bf16 %v612, %v610
          %v651 = vpack.c.bf16 %v615, %v613
          %v652 = vpack.c.bf16 %v616, %v614
          %v653 = vpack.c.bf16 %v619, %v617
          %v654 = vpack.c.bf16 %v620, %v618
          %v655 = vpack.c.bf16 %v623, %v621
          %v656 = vpack.c.bf16 %v624, %v622
          %v657 = vld [vmem:[#allocation2] sm:$0xff]
          %v658 = vld [vmem:[#allocation2 + $0x8] sm:$0xff]
          %v659 = vld [vmem:[#allocation2 + $0x10] sm:$0xff]
          %v660 = vld [vmem:[#allocation2 + $0x18] sm:$0xff]
          %v661 = vld [vmem:[#allocation2 + $0x20] sm:$0xff]
          %v662 = vld [vmem:[#allocation2 + $0x28] sm:$0xff]
          %v663 = vld [vmem:[#allocation2 + $0x30] sm:$0xff]
          %v664 = vld [vmem:[#allocation2 + $0x38] sm:$0xff]
          %v665 = vld [vmem:[#allocation2 + $0x40] sm:$0xff]
          %v666 = vld [vmem:[#allocation2 + $0x48] sm:$0xff]
          %v667 = vld [vmem:[#allocation2 + $0x50] sm:$0xff]
          %v668 = vld [vmem:[#allocation2 + $0x58] sm:$0xff]
          %v669 = vld [vmem:[#allocation2 + $0x60] sm:$0xff]
          %v670 = vld [vmem:[#allocation2 + $0x68] sm:$0xff]
          %v671 = vld [vmem:[#allocation2 + $0x70] sm:$0xff]
          %v672 = vld [vmem:[#allocation2 + $0x78] sm:$0xff]
          %v673 = vld [vmem:[#allocation2 + $0x80] sm:$0xff]
          %v674 = vld [vmem:[#allocation2 + $0x88] sm:$0xff]
          %v675 = vld [vmem:[#allocation2 + $0x90] sm:$0xff]
          %v676 = vld [vmem:[#allocation2 + $0x98] sm:$0xff]
          %v677 = vld [vmem:[#allocation2 + $0xa0] sm:$0xff]
          %v678 = vld [vmem:[#allocation2 + $0xa8] sm:$0xff]
          %v679 = vld [vmem:[#allocation2 + $0xb0] sm:$0xff]
          %v680 = vld [vmem:[#allocation2 + $0xb8] sm:$0xff]
          %v681 = vld [vmem:[#allocation2 + $0xc0] sm:$0xff]
          %v682 = vld [vmem:[#allocation2 + $0xc8] sm:$0xff]
          %v683 = vld [vmem:[#allocation2 + $0xd0] sm:$0xff]
          %v684 = vld [vmem:[#allocation2 + $0xd8] sm:$0xff]
          %v685 = vld [vmem:[#allocation2 + $0xe0] sm:$0xff]
          %v686 = vld [vmem:[#allocation2 + $0xe8] sm:$0xff]
          %v687 = vld [vmem:[#allocation2 + $0xf0] sm:$0xff]
          %v688 = vld [vmem:[#allocation2 + $0xf8] sm:$0xff]
          %v689 = vld [vmem:[%s426] sm:$0xf]
          %v690 = vld [vmem:[%s426 + $0x4] sm:$0xf]
          %v691 = vld [vmem:[%s426 + $0x8] sm:$0xf]
          %v692 = vld [vmem:[%s426 + $0xc] sm:$0xf]
          %v693 = vld [vmem:[%s426 + $0x10] sm:$0xf]
          %v694 = vld [vmem:[%s426 + $0x14] sm:$0xf]
          %v695 = vld [vmem:[%s426 + $0x18] sm:$0xf]
          %v696 = vld [vmem:[%s426 + $0x1c] sm:$0xf]
          %v697 = vld [vmem:[%s426 + $0x20] sm:$0xf]
          %v698 = vld [vmem:[%s426 + $0x24] sm:$0xf]
          %v699 = vld [vmem:[%s426 + $0x28] sm:$0xf]
          %v700 = vld [vmem:[%s426 + $0x2c] sm:$0xf]
          %v701 = vld [vmem:[%s426 + $0x30] sm:$0xf]
          %v702 = vld [vmem:[%s426 + $0x34] sm:$0xf]
          %v703 = vld [vmem:[%s426 + $0x38] sm:$0xf]
          %v704 = vld [vmem:[%s426 + $0x3c] sm:$0xf]
          %v705 = vld [vmem:[%s426 + $0x40] sm:$0xf]
          %v706 = vld [vmem:[%s426 + $0x44] sm:$0xf]
          %v707 = vld [vmem:[%s426 + $0x48] sm:$0xf]
          %v708 = vld [vmem:[%s426 + $0x4c] sm:$0xf]
          %v709 = vld [vmem:[%s426 + $0x50] sm:$0xf]
          %v710 = vld [vmem:[%s426 + $0x54] sm:$0xf]
          %v711 = vld [vmem:[%s426 + $0x58] sm:$0xf]
          %v712 = vld [vmem:[%s426 + $0x5c] sm:$0xf]
          %v713 = vld [vmem:[%s426 + $0x60] sm:$0xf]
          %v714 = vld [vmem:[%s426 + $0x64] sm:$0xf]
          %v715 = vld [vmem:[%s426 + $0x68] sm:$0xf]
          %v716 = vld [vmem:[%s426 + $0x6c] sm:$0xf]
          %v717 = vld [vmem:[%s426 + $0x70] sm:$0xf]
          %v718 = vld [vmem:[%s426 + $0x74] sm:$0xf]
          %v719 = vld [vmem:[%s426 + $0x78] sm:$0xf]
          %v720 = vld [vmem:[%s426 + $0x7c] sm:$0xf]
          %v753 = vunpack.c.l.b16 %v689
          %v754 = vunpack.c.l.b16 %v690
          %v755 = vunpack.c.l.b16 %v691
          %v756 = vunpack.c.l.b16 %v692
          %v757 = vunpack.c.l.b16 %v693
          %v758 = vunpack.c.l.b16 %v694
          %v759 = vunpack.c.l.b16 %v695
          %v760 = vunpack.c.l.b16 %v696
          %v761 = vunpack.c.l.b16 %v697
          %v762 = vunpack.c.l.b16 %v698
          %v763 = vunpack.c.l.b16 %v699
          %v764 = vunpack.c.l.b16 %v700
          %v765 = vunpack.c.l.b16 %v701
          %v766 = vunpack.c.l.b16 %v702
          %v767 = vunpack.c.l.b16 %v703
          %v768 = vunpack.c.l.b16 %v704
          %v769 = vunpack.c.l.b16 %v705
          %v770 = vunpack.c.l.b16 %v706
          %v771 = vunpack.c.l.b16 %v707
          %v772 = vunpack.c.l.b16 %v708
          %v773 = vunpack.c.l.b16 %v709
          %v774 = vunpack.c.l.b16 %v710
          %v775 = vunpack.c.l.b16 %v711
          %v776 = vunpack.c.l.b16 %v712
          %v777 = vunpack.c.l.b16 %v713
          %v778 = vunpack.c.l.b16 %v714
          %v779 = vunpack.c.l.b16 %v715
          %v780 = vunpack.c.l.b16 %v716
          %v781 = vunpack.c.l.b16 %v717
          %v782 = vunpack.c.l.b16 %v718
          %v783 = vunpack.c.l.b16 %v719
          %v784 = vunpack.c.l.b16 %v720
          %v785 = vpack.c.b16 %v754, %v753
          %v786 = vpack.c.b16 %v756, %v755
          %v787 = vpack.c.b16 %v758, %v757
          %v788 = vpack.c.b16 %v760, %v759
          %v789 = vpack.c.b16 %v762, %v761
          %v790 = vpack.c.b16 %v764, %v763
          %v791 = vpack.c.b16 %v766, %v765
          %v792 = vpack.c.b16 %v768, %v767
          %v793 = vpack.c.b16 %v770, %v769
          %v794 = vpack.c.b16 %v772, %v771
          %v795 = vpack.c.b16 %v774, %v773
          %v796 = vpack.c.b16 %v776, %v775
          %v797 = vpack.c.b16 %v778, %v777
          %v798 = vpack.c.b16 %v780, %v779
          %v799 = vpack.c.b16 %v782, %v781
          %v800 = vpack.c.b16 %v784, %v783
          %817 = vmatpush.bf16.msra.mxu0 %v792
          %818 = vmatpush.bf16.msra.mxu0 %v791
          %819 = vmatpush.bf16.msra.mxu0 %v790
          %820 = vmatpush.bf16.msra.mxu0 %v789
          %821 = vmatpush.bf16.msra.mxu0 %v788
          %822 = vmatpush.bf16.msra.mxu0 %v787
          %823 = vmatpush.bf16.msra.mxu0 %v786
          %824 = vmatpush.bf16.msra.mxu0 %v785
          %825 = vmatmul.bf16.gmra.mxu0 %v625
          %v826 = vpop.f32.mrf.mxu0
          %v827 = vadd.f32 0.0, %v826
          %v828 = vpop.f32.mrf.mxu0
          %v829 = vadd.f32 0.0, %v828
          %830 = vmatmul.bf16.gmra.mxu0 %v627
          %v831 = vpop.f32.mrf.mxu0
          %v832 = vadd.f32 0.0, %v831
          %v833 = vpop.f32.mrf.mxu0
          %v834 = vadd.f32 0.0, %v833
          %835 = vmatmul.bf16.gmra.mxu0 %v629
          %v836 = vpop.f32.mrf.mxu0
          %v837 = vadd.f32 0.0, %v836
          %v838 = vpop.f32.mrf.mxu0
          %v839 = vadd.f32 0.0, %v838
          %840 = vmatmul.bf16.gmra.mxu0 %v631
          %v841 = vpop.f32.mrf.mxu0
          %v842 = vadd.f32 0.0, %v841
          %v843 = vpop.f32.mrf.mxu0
          %v844 = vadd.f32 0.0, %v843
          %845 = vmatmul.bf16.gmra.mxu0 %v633
          %v846 = vpop.f32.mrf.mxu0
          %v847 = vadd.f32 0.0, %v846
          %v848 = vpop.f32.mrf.mxu0
          %v849 = vadd.f32 0.0, %v848
          %850 = vmatmul.bf16.gmra.mxu0 %v635
          %v851 = vpop.f32.mrf.mxu0
          %v852 = vadd.f32 0.0, %v851
          %v853 = vpop.f32.mrf.mxu0
          %v854 = vadd.f32 0.0, %v853
          %855 = vmatmul.bf16.gmra.mxu0 %v637
          %v856 = vpop.f32.mrf.mxu0
          %v857 = vadd.f32 0.0, %v856
          %v858 = vpop.f32.mrf.mxu0
          %v859 = vadd.f32 0.0, %v858
          %860 = vmatmul.bf16.gmra.mxu0 %v639
          %v861 = vpop.f32.mrf.mxu0
          %v862 = vadd.f32 0.0, %v861
          %v863 = vpop.f32.mrf.mxu0
          %v864 = vadd.f32 0.0, %v863
          %865 = vmatmul.bf16.gmra.mxu0 %v641
          %v866 = vpop.f32.mrf.mxu0
          %v867 = vadd.f32 0.0, %v866
          %v868 = vpop.f32.mrf.mxu0
          %v869 = vadd.f32 0.0, %v868
          %870 = vmatmul.bf16.gmra.mxu0 %v643
          %v871 = vpop.f32.mrf.mxu0
          %v872 = vadd.f32 0.0, %v871
          %v873 = vpop.f32.mrf.mxu0
          %v874 = vadd.f32 0.0, %v873
          %875 = vmatmul.bf16.gmra.mxu0 %v645
          %v876 = vpop.f32.mrf.mxu0
          %v877 = vadd.f32 0.0, %v876
          %v878 = vpop.f32.mrf.mxu0
          %v879 = vadd.f32 0.0, %v878
          %880 = vmatmul.bf16.gmra.mxu0 %v647
          %v881 = vpop.f32.mrf.mxu0
          %v882 = vadd.f32 0.0, %v881
          %v883 = vpop.f32.mrf.mxu0
          %v884 = vadd.f32 0.0, %v883
          %885 = vmatmul.bf16.gmra.mxu0 %v649
          %v886 = vpop.f32.mrf.mxu0
          %v887 = vadd.f32 0.0, %v886
          %v888 = vpop.f32.mrf.mxu0
          %v889 = vadd.f32 0.0, %v888
          %890 = vmatmul.bf16.gmra.mxu0 %v651
          %v891 = vpop.f32.mrf.mxu0
          %v892 = vadd.f32 0.0, %v891
          %v893 = vpop.f32.mrf.mxu0
          %v894 = vadd.f32 0.0, %v893
          %895 = vmatmul.bf16.gmra.mxu0 %v653
          %v896 = vpop.f32.mrf.mxu0
          %v897 = vadd.f32 0.0, %v896
          %v898 = vpop.f32.mrf.mxu0
          %v899 = vadd.f32 0.0, %v898
          %900 = vmatmul.bf16.gmra.mxu0 %v655
          %v901 = vpop.f32.mrf.mxu0
          %v902 = vadd.f32 0.0, %v901
          %v903 = vpop.f32.mrf.mxu0
          %v904 = vadd.f32 0.0, %v903
          %905 = vdwg.mxu0
          %906 = vmatpush.bf16.msra.mxu0 %v800
          %907 = vmatpush.bf16.msra.mxu0 %v799
          %908 = vmatpush.bf16.msra.mxu0 %v798
          %909 = vmatpush.bf16.msra.mxu0 %v797
          %910 = vmatpush.bf16.msra.mxu0 %v796
          %911 = vmatpush.bf16.msra.mxu0 %v795
          %912 = vmatpush.bf16.msra.mxu0 %v794
          %913 = vmatpush.bf16.msra.mxu0 %v793
          %914 = vmatmul.bf16.gmra.mxu0 %v626
          %v915 = vpop.f32.mrf.mxu0
          %v916 = vadd.f32 %v827, %v915
          %v917 = vpop.f32.mrf.mxu0
          %v918 = vadd.f32 %v829, %v917
          %919 = vmatmul.bf16.gmra.mxu0 %v628
          %v920 = vpop.f32.mrf.mxu0
          %v921 = vadd.f32 %v832, %v920
          %v922 = vpop.f32.mrf.mxu0
          %v923 = vadd.f32 %v834, %v922
          %924 = vmatmul.bf16.gmra.mxu0 %v630
          %v925 = vpop.f32.mrf.mxu0
          %v926 = vadd.f32 %v837, %v925
          %v927 = vpop.f32.mrf.mxu0
          %v928 = vadd.f32 %v839, %v927
          %929 = vmatmul.bf16.gmra.mxu0 %v632
          %v930 = vpop.f32.mrf.mxu0
          %v931 = vadd.f32 %v842, %v930
          %v932 = vpop.f32.mrf.mxu0
          %v933 = vadd.f32 %v844, %v932
          %934 = vmatmul.bf16.gmra.mxu0 %v634
          %v935 = vpop.f32.mrf.mxu0
          %v936 = vadd.f32 %v847, %v935
          %v937 = vpop.f32.mrf.mxu0
          %v938 = vadd.f32 %v849, %v937
          %939 = vmatmul.bf16.gmra.mxu0 %v636
          %v940 = vpop.f32.mrf.mxu0
          %v941 = vadd.f32 %v852, %v940
          %v942 = vpop.f32.mrf.mxu0
          %v943 = vadd.f32 %v854, %v942
          %944 = vmatmul.bf16.gmra.mxu0 %v638
          %v945 = vpop.f32.mrf.mxu0
          %v946 = vadd.f32 %v857, %v945
          %v947 = vpop.f32.mrf.mxu0
          %v948 = vadd.f32 %v859, %v947
          %949 = vmatmul.bf16.gmra.mxu0 %v640
          %v950 = vpop.f32.mrf.mxu0
          %v951 = vadd.f32 %v862, %v950
          %v952 = vpop.f32.mrf.mxu0
          %v953 = vadd.f32 %v864, %v952
          %954 = vmatmul.bf16.gmra.mxu0 %v642
          %v955 = vpop.f32.mrf.mxu0
          %v956 = vadd.f32 %v867, %v955
          %v957 = vpop.f32.mrf.mxu0
          %v958 = vadd.f32 %v869, %v957
          %959 = vmatmul.bf16.gmra.mxu0 %v644
          %v960 = vpop.f32.mrf.mxu0
          %v961 = vadd.f32 %v872, %v960
          %v962 = vpop.f32.mrf.mxu0
          %v963 = vadd.f32 %v874, %v962
          %964 = vmatmul.bf16.gmra.mxu0 %v646
          %v965 = vpop.f32.mrf.mxu0
          %v966 = vadd.f32 %v877, %v965
          %v967 = vpop.f32.mrf.mxu0
          %v968 = vadd.f32 %v879, %v967
          %969 = vmatmul.bf16.gmra.mxu0 %v648
          %v970 = vpop.f32.mrf.mxu0
          %v971 = vadd.f32 %v882, %v970
          %v972 = vpop.f32.mrf.mxu0
          %v973 = vadd.f32 %v884, %v972
          %974 = vmatmul.bf16.gmra.mxu0 %v650
          %v975 = vpop.f32.mrf.mxu0
          %v976 = vadd.f32 %v887, %v975
          %v977 = vpop.f32.mrf.mxu0
          %v978 = vadd.f32 %v889, %v977
          %979 = vmatmul.bf16.gmra.mxu0 %v652
          %v980 = vpop.f32.mrf.mxu0
          %v981 = vadd.f32 %v892, %v980
          %v982 = vpop.f32.mrf.mxu0
          %v983 = vadd.f32 %v894, %v982
          %984 = vmatmul.bf16.gmra.mxu0 %v654
          %v985 = vpop.f32.mrf.mxu0
          %v986 = vadd.f32 %v897, %v985
          %v987 = vpop.f32.mrf.mxu0
          %v988 = vadd.f32 %v899, %v987
          %989 = vmatmul.bf16.gmra.mxu0 %v656
          %v990 = vpop.f32.mrf.mxu0
          %v991 = vadd.f32 %v902, %v990
          %v992 = vpop.f32.mrf.mxu0
          %v993 = vadd.f32 %v904, %v992
          %994 = vdwg.mxu0
          %v995 = vadd.f32 %v657, %v916
          %v996 = vadd.f32 %v658, %v918
          %v997 = vadd.f32 %v659, %v921
          %v998 = vadd.f32 %v660, %v923
          %v999 = vadd.f32 %v661, %v926
          %v1000 = vadd.f32 %v662, %v928
          %v1001 = vadd.f32 %v663, %v931
          %v1002 = vadd.f32 %v664, %v933
          %v1003 = vadd.f32 %v665, %v936
          %v1004 = vadd.f32 %v666, %v938
          %v1005 = vadd.f32 %v667, %v941
          %v1006 = vadd.f32 %v668, %v943
          %v1007 = vadd.f32 %v669, %v946
          %v1008 = vadd.f32 %v670, %v948
          %v1009 = vadd.f32 %v671, %v951
          %v1010 = vadd.f32 %v672, %v953
          %v1011 = vadd.f32 %v673, %v956
          %v1012 = vadd.f32 %v674, %v958
          %v1013 = vadd.f32 %v675, %v961
          %v1014 = vadd.f32 %v676, %v963
          %v1015 = vadd.f32 %v677, %v966
          %v1016 = vadd.f32 %v678, %v968
          %v1017 = vadd.f32 %v679, %v971
          %v1018 = vadd.f32 %v680, %v973
          %v1019 = vadd.f32 %v681, %v976
          %v1020 = vadd.f32 %v682, %v978
          %v1021 = vadd.f32 %v683, %v981
          %v1022 = vadd.f32 %v684, %v983
          %v1023 = vadd.f32 %v685, %v986
          %v1024 = vadd.f32 %v686, %v988
          %v1025 = vadd.f32 %v687, %v991
          %v1026 = vadd.f32 %v688, %v993
          %1027 = vst [vmem:[#allocation2] sm:$0xff] %v995
          %1028 = vst [vmem:[#allocation2 + $0x8] sm:$0xff] %v996
          %1029 = vst [vmem:[#allocation2 + $0x10] sm:$0xff] %v997
          %1030 = vst [vmem:[#allocation2 + $0x18] sm:$0xff] %v998
          %1031 = vst [vmem:[#allocation2 + $0x20] sm:$0xff] %v999
          %1032 = vst [vmem:[#allocation2 + $0x28] sm:$0xff] %v1000
          %1033 = vst [vmem:[#allocation2 + $0x30] sm:$0xff] %v1001
          %1034 = vst [vmem:[#allocation2 + $0x38] sm:$0xff] %v1002
          %1035 = vst [vmem:[#allocation2 + $0x40] sm:$0xff] %v1003
          %1036 = vst [vmem:[#allocation2 + $0x48] sm:$0xff] %v1004
          %1037 = vst [vmem:[#allocation2 + $0x50] sm:$0xff] %v1005
          %1038 = vst [vmem:[#allocation2 + $0x58] sm:$0xff] %v1006
          %1039 = vst [vmem:[#allocation2 + $0x60] sm:$0xff] %v1007
          %1040 = vst [vmem:[#allocation2 + $0x68] sm:$0xff] %v1008
          %1041 = vst [vmem:[#allocation2 + $0x70] sm:$0xff] %v1009
          %1042 = vst [vmem:[#allocation2 + $0x78] sm:$0xff] %v1010
          %1043 = vst [vmem:[#allocation2 + $0x80] sm:$0xff] %v1011
          %1044 = vst [vmem:[#allocation2 + $0x88] sm:$0xff] %v1012
          %1045 = vst [vmem:[#allocation2 + $0x90] sm:$0xff] %v1013
          %1046 = vst [vmem:[#allocation2 + $0x98] sm:$0xff] %v1014
          %1047 = vst [vmem:[#allocation2 + $0xa0] sm:$0xff] %v1015
          %1048 = vst [vmem:[#allocation2 + $0xa8] sm:$0xff] %v1016
          %1049 = vst [vmem:[#allocation2 + $0xb0] sm:$0xff] %v1017
          %1050 = vst [vmem:[#allocation2 + $0xb8] sm:$0xff] %v1018
          %1051 = vst [vmem:[#allocation2 + $0xc0] sm:$0xff] %v1019
          %1052 = vst [vmem:[#allocation2 + $0xc8] sm:$0xff] %v1020
          %1053 = vst [vmem:[#allocation2 + $0xd0] sm:$0xff] %v1021
          %1054 = vst [vmem:[#allocation2 + $0xd8] sm:$0xff] %v1022
          %1055 = vst [vmem:[#allocation2 + $0xe0] sm:$0xff] %v1023
          %1056 = vst [vmem:[#allocation2 + $0xe8] sm:$0xff] %v1024
          %1057 = vst [vmem:[#allocation2 + $0xf0] sm:$0xff] %v1025
          %1058 = vst [vmem:[#allocation2 + $0xf8] sm:$0xff] %v1026
        $region71: #{tpu_custom_call.1} parent=54 // pred_fallthru
          _
        %p1059 = scmp.eq.s32.totalorder %s46, 1
        // Predicated region
        $region72: #{tpu_custom_call.1} parent=54 // pred_check
          %p1060 = pneg %p1059
        $region73: #{tpu_custom_call.1} parent=54 // pred_check_branch
          %1062 = sbr.rel (%p1060) target = $region75
        $region74: #{tpu_custom_call.1} parent=54 // pred_region
          %v1063 = vld [vmem:[#allocation2] sm:$0xff]
          %v1064 = vld [vmem:[#allocation2 + $0x8] sm:$0xff]
          %v1065 = vld [vmem:[#allocation2 + $0x10] sm:$0xff]
          %v1066 = vld [vmem:[#allocation2 + $0x18] sm:$0xff]
          %v1067 = vld [vmem:[#allocation2 + $0x20] sm:$0xff]
          %v1068 = vld [vmem:[#allocation2 + $0x28] sm:$0xff]
          %v1069 = vld [vmem:[#allocation2 + $0x30] sm:$0xff]
          %v1070 = vld [vmem:[#allocation2 + $0x38] sm:$0xff]
          %v1071 = vld [vmem:[#allocation2 + $0x40] sm:$0xff]
          %v1072 = vld [vmem:[#allocation2 + $0x48] sm:$0xff]
          %v1073 = vld [vmem:[#allocation2 + $0x50] sm:$0xff]
          %v1074 = vld [vmem:[#allocation2 + $0x58] sm:$0xff]
          %v1075 = vld [vmem:[#allocation2 + $0x60] sm:$0xff]
          %v1076 = vld [vmem:[#allocation2 + $0x68] sm:$0xff]
          %v1077 = vld [vmem:[#allocation2 + $0x70] sm:$0xff]
          %v1078 = vld [vmem:[#allocation2 + $0x78] sm:$0xff]
          %v1079 = vld [vmem:[#allocation2 + $0x80] sm:$0xff]
          %v1080 = vld [vmem:[#allocation2 + $0x88] sm:$0xff]
          %v1081 = vld [vmem:[#allocation2 + $0x90] sm:$0xff]
          %v1082 = vld [vmem:[#allocation2 + $0x98] sm:$0xff]
          %v1083 = vld [vmem:[#allocation2 + $0xa0] sm:$0xff]
          %v1084 = vld [vmem:[#allocation2 + $0xa8] sm:$0xff]
          %v1085 = vld [vmem:[#allocation2 + $0xb0] sm:$0xff]
          %v1086 = vld [vmem:[#allocation2 + $0xb8] sm:$0xff]
          %v1087 = vld [vmem:[#allocation2 + $0xc0] sm:$0xff]
          %v1088 = vld [vmem:[#allocation2 + $0xc8] sm:$0xff]
          %v1089 = vld [vmem:[#allocation2 + $0xd0] sm:$0xff]
          %v1090 = vld [vmem:[#allocation2 + $0xd8] sm:$0xff]
          %v1091 = vld [vmem:[#allocation2 + $0xe0] sm:$0xff]
          %v1092 = vld [vmem:[#allocation2 + $0xe8] sm:$0xff]
          %v1093 = vld [vmem:[#allocation2 + $0xf0] sm:$0xff]
          %v1094 = vld [vmem:[#allocation2 + $0xf8] sm:$0xff]
          %v1095 = vld [vmem:[%s435] sm:$0xff]
          %v1096 = vld [vmem:[%s435 + $0x8] sm:$0xff]
          %v1097 = vld [vmem:[%s435 + $0x10] sm:$0xff]
          %v1098 = vld [vmem:[%s435 + $0x18] sm:$0xff]
          %v1099 = vld [vmem:[%s435 + $0x20] sm:$0xff]
          %v1100 = vld [vmem:[%s435 + $0x28] sm:$0xff]
          %v1101 = vld [vmem:[%s435 + $0x30] sm:$0xff]
          %v1102 = vld [vmem:[%s435 + $0x38] sm:$0xff]
          %v1103 = vld [vmem:[%s435 + $0x40] sm:$0xff]
          %v1104 = vld [vmem:[%s435 + $0x48] sm:$0xff]
          %v1105 = vld [vmem:[%s435 + $0x50] sm:$0xff]
          %v1106 = vld [vmem:[%s435 + $0x58] sm:$0xff]
          %v1107 = vld [vmem:[%s435 + $0x60] sm:$0xff]
          %v1108 = vld [vmem:[%s435 + $0x68] sm:$0xff]
          %v1109 = vld [vmem:[%s435 + $0x70] sm:$0xff]
          %v1110 = vld [vmem:[%s435 + $0x78] sm:$0xff]
          %v1111 = vld [vmem:[%s435 + $0x80] sm:$0xff]
          %v1112 = vld [vmem:[%s435 + $0x88] sm:$0xff]
          %v1113 = vld [vmem:[%s435 + $0x90] sm:$0xff]
          %v1114 = vld [vmem:[%s435 + $0x98] sm:$0xff]
          %v1115 = vld [vmem:[%s435 + $0xa0] sm:$0xff]
          %v1116 = vld [vmem:[%s435 + $0xa8] sm:$0xff]
          %v1117 = vld [vmem:[%s435 + $0xb0] sm:$0xff]
          %v1118 = vld [vmem:[%s435 + $0xb8] sm:$0xff]
          %v1119 = vld [vmem:[%s435 + $0xc0] sm:$0xff]
          %v1120 = vld [vmem:[%s435 + $0xc8] sm:$0xff]
          %v1121 = vld [vmem:[%s435 + $0xd0] sm:$0xff]
          %v1122 = vld [vmem:[%s435 + $0xd8] sm:$0xff]
          %v1123 = vld [vmem:[%s435 + $0xe0] sm:$0xff]
          %v1124 = vld [vmem:[%s435 + $0xe8] sm:$0xff]
          %v1125 = vld [vmem:[%s435 + $0xf0] sm:$0xff]
          %v1126 = vld [vmem:[%s435 + $0xf8] sm:$0xff]
          %1128 = vset.pattern.permute.xlu0 0
          %1129 = vperm.xlu0 %1128, %v1095
          %v1130 = vpop.permute.xlu0 %1129
          %1133 = vset.pattern.permute.xlu0 0
          %1134 = vperm.xlu0 %1133, %v1096
          %v1135 = vpop.permute.xlu0 %1134
          %1138 = vset.pattern.permute.xlu0 0
          %1139 = vperm.xlu0 %1138, %v1097
          %v1140 = vpop.permute.xlu0 %1139
          %1143 = vset.pattern.permute.xlu0 0
          %1144 = vperm.xlu0 %1143, %v1098
          %v1145 = vpop.permute.xlu0 %1144
          %1148 = vset.pattern.permute.xlu0 0
          %1149 = vperm.xlu0 %1148, %v1099
          %v1150 = vpop.permute.xlu0 %1149
          %1153 = vset.pattern.permute.xlu0 0
          %1154 = vperm.xlu0 %1153, %v1100
          %v1155 = vpop.permute.xlu0 %1154
          %1158 = vset.pattern.permute.xlu0 0
          %1159 = vperm.xlu0 %1158, %v1101
          %v1160 = vpop.permute.xlu0 %1159
          %1163 = vset.pattern.permute.xlu0 0
          %1164 = vperm.xlu0 %1163, %v1102
          %v1165 = vpop.permute.xlu0 %1164
          %1168 = vset.pattern.permute.xlu0 0
          %1169 = vperm.xlu0 %1168, %v1103
          %v1170 = vpop.permute.xlu0 %1169
          %1173 = vset.pattern.permute.xlu0 0
          %1174 = vperm.xlu0 %1173, %v1104
          %v1175 = vpop.permute.xlu0 %1174
          %1178 = vset.pattern.permute.xlu0 0
          %1179 = vperm.xlu0 %1178, %v1105
          %v1180 = vpop.permute.xlu0 %1179
          %1183 = vset.pattern.permute.xlu0 0
          %1184 = vperm.xlu0 %1183, %v1106
          %v1185 = vpop.permute.xlu0 %1184
          %1188 = vset.pattern.permute.xlu0 0
          %1189 = vperm.xlu0 %1188, %v1107
          %v1190 = vpop.permute.xlu0 %1189
          %1193 = vset.pattern.permute.xlu0 0
          %1194 = vperm.xlu0 %1193, %v1108
          %v1195 = vpop.permute.xlu0 %1194
          %1198 = vset.pattern.permute.xlu0 0
          %1199 = vperm.xlu0 %1198, %v1109
          %v1200 = vpop.permute.xlu0 %1199
          %1203 = vset.pattern.permute.xlu0 0
          %1204 = vperm.xlu0 %1203, %v1110
          %v1205 = vpop.permute.xlu0 %1204
          %1208 = vset.pattern.permute.xlu0 0
          %1209 = vperm.xlu0 %1208, %v1111
          %v1210 = vpop.permute.xlu0 %1209
          %1213 = vset.pattern.permute.xlu0 0
          %1214 = vperm.xlu0 %1213, %v1112
          %v1215 = vpop.permute.xlu0 %1214
          %1218 = vset.pattern.permute.xlu0 0
          %1219 = vperm.xlu0 %1218, %v1113
          %v1220 = vpop.permute.xlu0 %1219
          %1223 = vset.pattern.permute.xlu0 0
          %1224 = vperm.xlu0 %1223, %v1114
          %v1225 = vpop.permute.xlu0 %1224
          %1228 = vset.pattern.permute.xlu0 0
          %1229 = vperm.xlu0 %1228, %v1115
          %v1230 = vpop.permute.xlu0 %1229
          %1233 = vset.pattern.permute.xlu0 0
          %1234 = vperm.xlu0 %1233, %v1116
          %v1235 = vpop.permute.xlu0 %1234
          %1238 = vset.pattern.permute.xlu0 0
          %1239 = vperm.xlu0 %1238, %v1117
          %v1240 = vpop.permute.xlu0 %1239
          %1243 = vset.pattern.permute.xlu0 0
          %1244 = vperm.xlu0 %1243, %v1118
          %v1245 = vpop.permute.xlu0 %1244
          %1248 = vset.pattern.permute.xlu0 0
          %1249 = vperm.xlu0 %1248, %v1119
          %v1250 = vpop.permute.xlu0 %1249
          %1253 = vset.pattern.permute.xlu0 0
          %1254 = vperm.xlu0 %1253, %v1120
          %v1255 = vpop.permute.xlu0 %1254
          %1258 = vset.pattern.permute.xlu0 0
          %1259 = vperm.xlu0 %1258, %v1121
          %v1260 = vpop.permute.xlu0 %1259
          %1263 = vset.pattern.permute.xlu0 0
          %1264 = vperm.xlu0 %1263, %v1122
          %v1265 = vpop.permute.xlu0 %1264
          %1268 = vset.pattern.permute.xlu0 0
          %1269 = vperm.xlu0 %1268, %v1123
          %v1270 = vpop.permute.xlu0 %1269
          %1273 = vset.pattern.permute.xlu0 0
          %1274 = vperm.xlu0 %1273, %v1124
          %v1275 = vpop.permute.xlu0 %1274
          %1278 = vset.pattern.permute.xlu0 0
          %1279 = vperm.xlu0 %1278, %v1125
          %v1280 = vpop.permute.xlu0 %1279
          %1283 = vset.pattern.permute.xlu0 0
          %1284 = vperm.xlu0 %1283, %v1126
          %v1285 = vpop.permute.xlu0 %1284
          %v1287 = vmul.f32 %v1063, %v1130
          %v1288 = vmul.f32 %v1064, %v1135
          %v1289 = vmul.f32 %v1065, %v1140
          %v1290 = vmul.f32 %v1066, %v1145
          %v1291 = vmul.f32 %v1067, %v1150
          %v1292 = vmul.f32 %v1068, %v1155
          %v1293 = vmul.f32 %v1069, %v1160
          %v1294 = vmul.f32 %v1070, %v1165
          %v1295 = vmul.f32 %v1071, %v1170
          %v1296 = vmul.f32 %v1072, %v1175
          %v1297 = vmul.f32 %v1073, %v1180
          %v1298 = vmul.f32 %v1074, %v1185
          %v1299 = vmul.f32 %v1075, %v1190
          %v1300 = vmul.f32 %v1076, %v1195
          %v1301 = vmul.f32 %v1077, %v1200
          %v1302 = vmul.f32 %v1078, %v1205
          %v1303 = vmul.f32 %v1079, %v1210
          %v1304 = vmul.f32 %v1080, %v1215
          %v1305 = vmul.f32 %v1081, %v1220
          %v1306 = vmul.f32 %v1082, %v1225
          %v1307 = vmul.f32 %v1083, %v1230
          %v1308 = vmul.f32 %v1084, %v1235
          %v1309 = vmul.f32 %v1085, %v1240
          %v1310 = vmul.f32 %v1086, %v1245
          %v1311 = vmul.f32 %v1087, %v1250
          %v1312 = vmul.f32 %v1088, %v1255
          %v1313 = vmul.f32 %v1089, %v1260
          %v1314 = vmul.f32 %v1090, %v1265
          %v1315 = vmul.f32 %v1091, %v1270
          %v1316 = vmul.f32 %v1092, %v1275
          %v1317 = vmul.f32 %v1093, %v1280
          %v1318 = vmul.f32 %v1094, %v1285
          %v1319 = vpack.c.bf16 %v1287, %v1287
          %v1320 = vpack.c.bf16 %v1288, %v1288
          %v1321 = vpack.c.bf16 %v1289, %v1289
          %v1322 = vpack.c.bf16 %v1290, %v1290
          %v1323 = vpack.c.bf16 %v1291, %v1291
          %v1324 = vpack.c.bf16 %v1292, %v1292
          %v1325 = vpack.c.bf16 %v1293, %v1293
          %v1326 = vpack.c.bf16 %v1294, %v1294
          %v1327 = vpack.c.bf16 %v1295, %v1295
          %v1328 = vpack.c.bf16 %v1296, %v1296
          %v1329 = vpack.c.bf16 %v1297, %v1297
          %v1330 = vpack.c.bf16 %v1298, %v1298
          %v1331 = vpack.c.bf16 %v1299, %v1299
          %v1332 = vpack.c.bf16 %v1300, %v1300
          %v1333 = vpack.c.bf16 %v1301, %v1301
          %v1334 = vpack.c.bf16 %v1302, %v1302
          %v1335 = vpack.c.bf16 %v1303, %v1303
          %v1336 = vpack.c.bf16 %v1304, %v1304
          %v1337 = vpack.c.bf16 %v1305, %v1305
          %v1338 = vpack.c.bf16 %v1306, %v1306
          %v1339 = vpack.c.bf16 %v1307, %v1307
          %v1340 = vpack.c.bf16 %v1308, %v1308
          %v1341 = vpack.c.bf16 %v1309, %v1309
          %v1342 = vpack.c.bf16 %v1310, %v1310
          %v1343 = vpack.c.bf16 %v1311, %v1311
          %v1344 = vpack.c.bf16 %v1312, %v1312
          %v1345 = vpack.c.bf16 %v1313, %v1313
          %v1346 = vpack.c.bf16 %v1314, %v1314
          %v1347 = vpack.c.bf16 %v1315, %v1315
          %v1348 = vpack.c.bf16 %v1316, %v1316
          %v1349 = vpack.c.bf16 %v1317, %v1317
          %v1350 = vpack.c.bf16 %v1318, %v1318
          %1351 = vst [vmem:[%s406] sm:$0xf] %v1319
          %1352 = vst [vmem:[%s406 + $0x4] sm:$0xf] %v1320
          %1353 = vst [vmem:[%s406 + $0x8] sm:$0xf] %v1321
          %1354 = vst [vmem:[%s406 + $0xc] sm:$0xf] %v1322
          %1355 = vst [vmem:[%s406 + $0x10] sm:$0xf] %v1323
          %1356 = vst [vmem:[%s406 + $0x14] sm:$0xf] %v1324
          %1357 = vst [vmem:[%s406 + $0x18] sm:$0xf] %v1325
          %1358 = vst [vmem:[%s406 + $0x1c] sm:$0xf] %v1326
          %1359 = vst [vmem:[%s406 + $0x20] sm:$0xf] %v1327
          %1360 = vst [vmem:[%s406 + $0x24] sm:$0xf] %v1328
          %1361 = vst [vmem:[%s406 + $0x28] sm:$0xf] %v1329
          %1362 = vst [vmem:[%s406 + $0x2c] sm:$0xf] %v1330
          %1363 = vst [vmem:[%s406 + $0x30] sm:$0xf] %v1331
          %1364 = vst [vmem:[%s406 + $0x34] sm:$0xf] %v1332
          %1365 = vst [vmem:[%s406 + $0x38] sm:$0xf] %v1333
          %1366 = vst [vmem:[%s406 + $0x3c] sm:$0xf] %v1334
          %1367 = vst [vmem:[%s406 + $0x40] sm:$0xf] %v1335
          %1368 = vst [vmem:[%s406 + $0x44] sm:$0xf] %v1336
          %1369 = vst [vmem:[%s406 + $0x48] sm:$0xf] %v1337
          %1370 = vst [vmem:[%s406 + $0x4c] sm:$0xf] %v1338
          %1371 = vst [vmem:[%s406 + $0x50] sm:$0xf] %v1339
          %1372 = vst [vmem:[%s406 + $0x54] sm:$0xf] %v1340
          %1373 = vst [vmem:[%s406 + $0x58] sm:$0xf] %v1341
          %1374 = vst [vmem:[%s406 + $0x5c] sm:$0xf] %v1342
          %1375 = vst [vmem:[%s406 + $0x60] sm:$0xf] %v1343
          %1376 = vst [vmem:[%s406 + $0x64] sm:$0xf] %v1344
          %1377 = vst [vmem:[%s406 + $0x68] sm:$0xf] %v1345
          %1378 = vst [vmem:[%s406 + $0x6c] sm:$0xf] %v1346
          %1379 = vst [vmem:[%s406 + $0x70] sm:$0xf] %v1347
          %1380 = vst [vmem:[%s406 + $0x74] sm:$0xf] %v1348
          %1381 = vst [vmem:[%s406 + $0x78] sm:$0xf] %v1349
          %1382 = vst [vmem:[%s406 + $0x7c] sm:$0xf] %v1350
          %v1383 = vld [vmem:[%s364] sm:$0xff]
          %v1384 = vld [vmem:[%s364 + $0x8] sm:$0xff]
          %v1385 = vld [vmem:[%s364 + $0x10] sm:$0xff]
          %v1386 = vld [vmem:[%s364 + $0x18] sm:$0xff]
          %v1387 = vld [vmem:[%s364 + $0x20] sm:$0xff]
          %v1388 = vld [vmem:[%s364 + $0x28] sm:$0xff]
          %v1389 = vld [vmem:[%s364 + $0x30] sm:$0xff]
          %v1390 = vld [vmem:[%s364 + $0x38] sm:$0xff]
          %v1391 = vld [vmem:[%s364 + $0x40] sm:$0xff]
          %v1392 = vld [vmem:[%s364 + $0x48] sm:$0xff]
          %v1393 = vld [vmem:[%s364 + $0x50] sm:$0xff]
          %v1394 = vld [vmem:[%s364 + $0x58] sm:$0xff]
          %v1395 = vld [vmem:[%s364 + $0x60] sm:$0xff]
          %v1396 = vld [vmem:[%s364 + $0x68] sm:$0xff]
          %v1397 = vld [vmem:[%s364 + $0x70] sm:$0xff]
          %v1398 = vld [vmem:[%s364 + $0x78] sm:$0xff]
          %v1399 = vld [vmem:[%s364 + $0x80] sm:$0xff]
          %v1400 = vld [vmem:[%s364 + $0x88] sm:$0xff]
          %v1401 = vld [vmem:[%s364 + $0x90] sm:$0xff]
          %v1402 = vld [vmem:[%s364 + $0x98] sm:$0xff]
          %v1403 = vld [vmem:[%s364 + $0xa0] sm:$0xff]
          %v1404 = vld [vmem:[%s364 + $0xa8] sm:$0xff]
          %v1405 = vld [vmem:[%s364 + $0xb0] sm:$0xff]
          %v1406 = vld [vmem:[%s364 + $0xb8] sm:$0xff]
          %v1407 = vld [vmem:[%s364 + $0xc0] sm:$0xff]
          %v1408 = vld [vmem:[%s364 + $0xc8] sm:$0xff]
          %v1409 = vld [vmem:[%s364 + $0xd0] sm:$0xff]
          %v1410 = vld [vmem:[%s364 + $0xd8] sm:$0xff]
          %v1411 = vld [vmem:[%s364 + $0xe0] sm:$0xff]
          %v1412 = vld [vmem:[%s364 + $0xe8] sm:$0xff]
          %v1413 = vld [vmem:[%s364 + $0xf0] sm:$0xff]
          %v1414 = vld [vmem:[%s364 + $0xf8] sm:$0xff]
          %v1415 = vmul.f32 %v1287, 0.25
          %v1416 = vmul.f32 %v1288, 0.25
          %v1417 = vmul.f32 %v1289, 0.25
          %v1418 = vmul.f32 %v1290, 0.25
          %v1419 = vmul.f32 %v1291, 0.25
          %v1420 = vmul.f32 %v1292, 0.25
          %v1421 = vmul.f32 %v1293, 0.25
          %v1422 = vmul.f32 %v1294, 0.25
          %v1423 = vmul.f32 %v1295, 0.25
          %v1424 = vmul.f32 %v1296, 0.25
          %v1425 = vmul.f32 %v1297, 0.25
          %v1426 = vmul.f32 %v1298, 0.25
          %v1427 = vmul.f32 %v1299, 0.25
          %v1428 = vmul.f32 %v1300, 0.25
          %v1429 = vmul.f32 %v1301, 0.25
          %v1430 = vmul.f32 %v1302, 0.25
          %v1431 = vmul.f32 %v1303, 0.25
          %v1432 = vmul.f32 %v1304, 0.25
          %v1433 = vmul.f32 %v1305, 0.25
          %v1434 = vmul.f32 %v1306, 0.25
          %v1435 = vmul.f32 %v1307, 0.25
          %v1436 = vmul.f32 %v1308, 0.25
          %v1437 = vmul.f32 %v1309, 0.25
          %v1438 = vmul.f32 %v1310, 0.25
          %v1439 = vmul.f32 %v1311, 0.25
          %v1440 = vmul.f32 %v1312, 0.25
          %v1441 = vmul.f32 %v1313, 0.25
          %v1442 = vmul.f32 %v1314, 0.25
          %v1443 = vmul.f32 %v1315, 0.25
          %v1444 = vmul.f32 %v1316, 0.25
          %v1445 = vmul.f32 %v1317, 0.25
          %v1446 = vmul.f32 %v1318, 0.25
          %v1447 = vadd.f32 %v1383, %v1415
          %v1448 = vadd.f32 %v1384, %v1416
          %v1449 = vadd.f32 %v1385, %v1417
          %v1450 = vadd.f32 %v1386, %v1418
          %v1451 = vadd.f32 %v1387, %v1419
          %v1452 = vadd.f32 %v1388, %v1420
          %v1453 = vadd.f32 %v1389, %v1421
          %v1454 = vadd.f32 %v1390, %v1422
          %v1455 = vadd.f32 %v1391, %v1423
          %v1456 = vadd.f32 %v1392, %v1424
          %v1457 = vadd.f32 %v1393, %v1425
          %v1458 = vadd.f32 %v1394, %v1426
          %v1459 = vadd.f32 %v1395, %v1427
          %v1460 = vadd.f32 %v1396, %v1428
          %v1461 = vadd.f32 %v1397, %v1429
          %v1462 = vadd.f32 %v1398, %v1430
          %v1463 = vadd.f32 %v1399, %v1431
          %v1464 = vadd.f32 %v1400, %v1432
          %v1465 = vadd.f32 %v1401, %v1433
          %v1466 = vadd.f32 %v1402, %v1434
          %v1467 = vadd.f32 %v1403, %v1435
          %v1468 = vadd.f32 %v1404, %v1436
          %v1469 = vadd.f32 %v1405, %v1437
          %v1470 = vadd.f32 %v1406, %v1438
          %v1471 = vadd.f32 %v1407, %v1439
          %v1472 = vadd.f32 %v1408, %v1440
          %v1473 = vadd.f32 %v1409, %v1441
          %v1474 = vadd.f32 %v1410, %v1442
          %v1475 = vadd.f32 %v1411, %v1443
          %v1476 = vadd.f32 %v1412, %v1444
          %v1477 = vadd.f32 %v1413, %v1445
          %v1478 = vadd.f32 %v1414, %v1446
          %1479 = vst [vmem:[%s413] sm:$0xff] %v1447
          %1480 = vst [vmem:[%s413 + $0x8] sm:$0xff] %v1448
          %1481 = vst [vmem:[%s413 + $0x10] sm:$0xff] %v1449
          %1482 = vst [vmem:[%s413 + $0x18] sm:$0xff] %v1450
          %1483 = vst [vmem:[%s413 + $0x20] sm:$0xff] %v1451
          %1484 = vst [vmem:[%s413 + $0x28] sm:$0xff] %v1452
          %1485 = vst [vmem:[%s413 + $0x30] sm:$0xff] %v1453
          %1486 = vst [vmem:[%s413 + $0x38] sm:$0xff] %v1454
          %1487 = vst [vmem:[%s413 + $0x40] sm:$0xff] %v1455
          %1488 = vst [vmem:[%s413 + $0x48] sm:$0xff] %v1456
          %1489 = vst [vmem:[%s413 + $0x50] sm:$0xff] %v1457
          %1490 = vst [vmem:[%s413 + $0x58] sm:$0xff] %v1458
          %1491 = vst [vmem:[%s413 + $0x60] sm:$0xff] %v1459
          %1492 = vst [vmem:[%s413 + $0x68] sm:$0xff] %v1460
          %1493 = vst [vmem:[%s413 + $0x70] sm:$0xff] %v1461
          %1494 = vst [vmem:[%s413 + $0x78] sm:$0xff] %v1462
          %1495 = vst [vmem:[%s413 + $0x80] sm:$0xff] %v1463
          %1496 = vst [vmem:[%s413 + $0x88] sm:$0xff] %v1464
          %1497 = vst [vmem:[%s413 + $0x90] sm:$0xff] %v1465
          %1498 = vst [vmem:[%s413 + $0x98] sm:$0xff] %v1466
          %1499 = vst [vmem:[%s413 + $0xa0] sm:$0xff] %v1467
          %1500 = vst [vmem:[%s413 + $0xa8] sm:$0xff] %v1468
          %1501 = vst [vmem:[%s413 + $0xb0] sm:$0xff] %v1469
          %1502 = vst [vmem:[%s413 + $0xb8] sm:$0xff] %v1470
          %1503 = vst [vmem:[%s413 + $0xc0] sm:$0xff] %v1471
          %1504 = vst [vmem:[%s413 + $0xc8] sm:$0xff] %v1472
          %1505 = vst [vmem:[%s413 + $0xd0] sm:$0xff] %v1473
          %1506 = vst [vmem:[%s413 + $0xd8] sm:$0xff] %v1474
          %1507 = vst [vmem:[%s413 + $0xe0] sm:$0xff] %v1475
          %1508 = vst [vmem:[%s413 + $0xe8] sm:$0xff] %v1476
          %1509 = vst [vmem:[%s413 + $0xf0] sm:$0xff] %v1477
          %1510 = vst [vmem:[%s413 + $0xf8] sm:$0xff] %v1478
        $region75: #{tpu_custom_call.1} parent=54 // pred_fallthru
          _
        %s1511 = sand.u32 %s179, 1
        %s1512 = scalar_lea.sflag [#allocation9], %s1511
        %s1513 = sand.u32 %s179, 1
        %s1514 = smul.addr %s1513, 128
        %s1515 = scalar_lea.vmem [#allocation10], %s1514
        %s1516 = sand.u32 %s205, 1
        %s1517 = scalar_lea.sflag [#allocation12], %s1516
        %s1518 = sand.u32 %s205, 1
        %s1519 = smul.addr %s1518, 256
        %s1520 = scalar_lea.vmem [#allocation11], %s1519
        // Predicated region
        $region76: #{tpu_custom_call.1} parent=54 // pred_check
          %p1521 = pneg %p189
        $region77: #{tpu_custom_call.1} parent=54 // pred_check_branch
          %1523 = sbr.rel (%p1521) target = $region79
        $region78: #{tpu_custom_call.1} parent=54 // pred_region
          %s1524 = smul.u32 32, %s45
          %1526 = vsyncadd %s1512, 0
          %s1527 = smul.addr %s1524, 4
          %s1528 = scalar_lea.hbm %s6, %s1527
          %s1529 = sshll.u32 %s1515, 4
          %s1530 = int_to_ptr.vmem [resolvable:$true] %s1529
          %s1531 = sshll.u32 %s1528, 4
          %s1532 = int_to_ptr.hbm [resolvable:$true] %s1531
          %1537 = dma.vmem_to_hbm [thread:$0]  %s1530, 2048, %s1532, %s1512, 64, 64, 4
        $region79: #{tpu_custom_call.1} parent=54 // pred_fallthru
          _
        // Predicated region
        $region80: #{tpu_custom_call.1} parent=54 // pred_check
          %p1538 = pneg %p215
        $region81: #{tpu_custom_call.1} parent=54 // pred_check_branch
          %1540 = sbr.rel (%p1538) target = $region83
        $region82: #{tpu_custom_call.1} parent=54 // pred_region
          %s1541 = smul.u32 32, %s45
          %1543 = vsyncadd %s1517, 0
          %s1544 = smul.addr %s1541, 8
          %s1545 = scalar_lea.hbm %s7, %s1544
          %s1546 = sshll.u32 %s1520, 4
          %s1547 = int_to_ptr.vmem [resolvable:$true] %s1546
          %s1548 = sshll.u32 %s1545, 4
          %s1549 = int_to_ptr.hbm [resolvable:$true] %s1548
          %1554 = dma.vmem_to_hbm [thread:$0]  %s1547, 4096, %s1549, %s1517, 128, 128, 8
        $region83: #{tpu_custom_call.1} parent=54 // pred_fallthru
          _
      $region55: #{tpu_custom_call.1} parent=5 // pred_fallthru
        _
      %p1555 = scmp.le.s32.totalorder 2, %s36
      // Predicated region
      $region84: #{tpu_custom_call.1} parent=5 // pred_check
        %p1556 = pneg %p1555
      $region85: #{tpu_custom_call.1} parent=5 // pred_check_branch
        %1558 = sbr.rel (%p1556) target = $region87
      $region86: #{tpu_custom_call.1} parent=5 // pred_region
        %s1559 = ssub.s32 %s36, 2
        // Predicated region
        $region88: #{tpu_custom_call.1} parent=86 // pred_check
          %p1560 = pneg %p195
        $region89: #{tpu_custom_call.1} parent=86 // pred_check_branch
          %1562 = sbr.rel (%p1560) target = $region91
        $region90: #{tpu_custom_call.1} parent=86 // pred_region
          %s1563 = sand.u32 %s180, 1
          %s1564 = scalar_lea.sflag [#allocation9], %s1563
          %s1565 = sand.u32 %s180, 1
          %s1566 = smul.addr %s1565, 128
          %s1567 = scalar_lea.vmem [#allocation10], %s1566
          %1569 = dma.done %s1564, 2048
        $region91: #{tpu_custom_call.1} parent=86 // pred_fallthru
          _
        // Predicated region
        $region92: #{tpu_custom_call.1} parent=86 // pred_check
          %p1570 = pneg %p221
        $region93: #{tpu_custom_call.1} parent=86 // pred_check_branch
          %1572 = sbr.rel (%p1570) target = $region95
        $region94: #{tpu_custom_call.1} parent=86 // pred_region
          %s1573 = sand.u32 %s206, 1
          %s1574 = scalar_lea.sflag [#allocation12], %s1573
          %s1575 = sand.u32 %s206, 1
          %s1576 = smul.addr %s1575, 256
          %s1577 = scalar_lea.vmem [#allocation11], %s1576
          %1579 = dma.done %s1574, 4096
        $region95: #{tpu_custom_call.1} parent=86 // pred_fallthru
          _
      $region87: #{tpu_custom_call.1} parent=5 // pred_fallthru
        _
    $region6: #{tpu_custom_call.1} parent=1 // loop_footer
      %s40 = sadd.s32 1, %s36
    $region7: #{tpu_custom_call.1} parent=1 // loop_footer_branch
      %35 = sbr.rel target = $region3
    $region8: #{tpu_custom_call.1} parent=1 // loop_exit
      _
    %1580 = vsyncpa [#allocation8], 1
    %s1581 = scalar_lea.sflag [#allocation8], 1
    %1582 = vsyncpa %s1581, 1
    %1583 = vsyncpa [#allocation9], 1
    %s1584 = scalar_lea.sflag [#allocation9], 1
    %1585 = vsyncpa %s1584, 1
    %1586 = vsyncpa [#allocation12], 1
    %s1587 = scalar_lea.sflag [#allocation12], 1
    %1588 = vsyncpa %s1587, 1

</llo_original>
